<compile_context>
chip_gen: v7x
topology: tpu7x:2x2x1
jax: 0.10.0
libtpu: 0.0.40
codegen_flags: <defaults>
</compile_context>

<pallas_src>
import functools

import jax
import jax.numpy as jnp
from jax.experimental import pallas as pl
from jax.experimental.pallas import tpu as pltpu

_BN_EPS = 1e-5


def _silu(v):
    # x * sigmoid(x) = x / (1 + exp(-x)); exp goes to the EUP.
    return v / (1.0 + jnp.exp(-v))


def _fold_bn(w, gamma, beta, mean, var, eps=_BN_EPS):
    """Fold eval-mode BatchNorm into a conv weight (OIHW) + bias."""
    std = jnp.sqrt(var + eps)
    scale = gamma / std
    w_f = w * scale[:, None, None, None]
    b_f = beta - mean * scale
    return w_f, b_f


def _repnr_bottleneck_kernel(xw_ref, w3_ref, b1_ref, w2_ref, b2_ref, out_ref, *, add):
    """One (batch, row-tile) step.

    xw_ref : (TH+2, W+2, C1)  zero-padded input row window (halo of 1)
    w3_ref : (9, C1, Cm)      fused RepConvN 3x3 weight, one (C1, Cm) matrix per tap
    b1_ref : (1, Cm)          fused RepConvN bias
    w2_ref : (Cm, C2)         fused cv2 1x1 weight
    b2_ref : (1, C2)          fused cv2 bias
    out_ref: (TH, W, C2)
    """
    th, w, c2 = out_ref.shape
    c1 = xw_ref.shape[-1]
    cm = w3_ref.shape[-1]

    # 3x3 conv (stride 1, pad 1) as 9 shifted matmuls on the MXU.
    acc = jnp.zeros((th * w, cm), jnp.float32)
    tap = 0
    for dy in range(3):
        for dx in range(3):
            patch = xw_ref[dy:dy + th, dx:dx + w, :]              # (TH, W, C1)
            acc = acc + jnp.dot(
                patch.reshape(th * w, c1),
                w3_ref[tap],
                preferred_element_type=jnp.float32,
            )
            tap += 1

    h = _silu(acc + b1_ref[...])                                   # (TH*W, Cm)

    # cv2: 1x1 conv == one matmul over channels.
    y = jnp.dot(h, w2_ref[...], preferred_element_type=jnp.float32) + b2_ref[...]
    y = _silu(y)                                                   # (TH*W, C2)

    if add:
        # residual: centre of the padded window == the original rows of this tile
        xc = xw_ref[1:1 + th, 1:1 + w, :].reshape(th * w, c1)
        y = y + xc

    out_ref[...] = y.reshape(th, w, c2).astype(out_ref.dtype)


def rep_nr_bottleneck_base(x, w1_3, bn1, w1_1, bn2, w2, bn3, *, shortcut=True,
                           row_tile=None):
    """RepNRBottleneckBase forward. x is NCHW (PyTorch convention), float32."""
    n, c1, h, w = x.shape
    cm = w1_3.shape[0]
    c2 = w2.shape[0]
    add = bool(shortcut) and (c1 == c2)

    # ---- fold BN + collapse RepConvN(3x3 + 1x1) into one equivalent 3x3 conv ----
    k3, b3 = _fold_bn(w1_3, *bn1)
    k1, b1 = _fold_bn(w1_1, *bn2)
    k_eq = k3 + jnp.pad(k1, ((0, 0), (0, 0), (1, 1), (1, 1)))      # (Cm, C1, 3, 3)
    b_eq = b3 + b1                                                 # (Cm,)
    k2, b2 = _fold_bn(w2, *bn3)                                    # (C2, Cm, 1, 1)

    # kernel-friendly layouts
    w3_taps = jnp.transpose(k_eq, (2, 3, 1, 0)).reshape(9, c1, cm)  # (tap, C1, Cm)
    w2_mat = jnp.transpose(k2[:, :, 0, 0], (1, 0))                  # (Cm, C2)
    b1_row = b_eq.reshape(1, cm)
    b2_row = b2.reshape(1, c2)

    # ---- NHWC, spatial zero-pad, overlapping row-tile windows (halo = 1) ----
    x_nhwc = jnp.transpose(x, (0, 2, 3, 1))                         # (N, H, W, C1)
    xp = jnp.pad(x_nhwc, ((0, 0), (1, 1), (1, 1), (0, 0)))          # (N, H+2, W+2, C1)

    if row_tile is None:
        row_tile = next((t for t in (64, 32, 16, 8) if h % t == 0), h)
    th = row_tile if (h % row_tile == 0) else h
    n_tiles = h // th
    wp = w + 2

    xw = jnp.stack([xp[:, t * th: t * th + th + 2, :, :] for t in range(n_tiles)],
                   axis=1)                                          # (N, T, TH+2, W+2, C1)

    bytes_per = jnp.dtype(x.dtype).itemsize
    cost = pl.CostEstimate(
        flops=int(2 * n * h * w * (9 * c1 * cm + cm * c2)),
        transcendentals=int(n * h * w * (cm + c2)),
        bytes_accessed=int((xw.size + w3_taps.size + w2_mat.size + b1_row.size
                            + b2_row.size + n * h * w * c2) * bytes_per),
    )

    kernel = functools.partial(_repnr_bottleneck_kernel, add=add)

    out_nhwc = pl.pallas_call(
        kernel,
        out_shape=jax.ShapeDtypeStruct((n, h, w, c2), x.dtype),
        grid_spec=pltpu.PrefetchScalarGridSpec(
            num_scalar_prefetch=0,
            grid=(n, n_tiles),
            in_specs=[
                pl.BlockSpec((None, None, th + 2, wp, c1),
                             lambda b, t: (b, t, 0, 0, 0)),
                pl.BlockSpec((9, c1, cm), lambda b, t: (0, 0, 0)),
                pl.BlockSpec((1, cm), lambda b, t: (0, 0)),
                pl.BlockSpec((cm, c2), lambda b, t: (0, 0)),
                pl.BlockSpec((1, c2), lambda b, t: (0, 0)),
            ],
            out_specs=pl.BlockSpec((None, th, w, c2), lambda b, t: (b, t, 0, 0)),
        ),
        compiler_params=pltpu.CompilerParams(
            dimension_semantics=("parallel", "parallel"),
        ),
        cost_estimate=cost,
    )(xw, w3_taps, b1_row, w2_mat, b2_row)

    return jnp.transpose(out_nhwc, (0, 3, 1, 2))                    # back to NCHW


# ------------------------- pure-JAX reference (for checking) -------------------------
def _ref_forward(x, w1_3, bn1, w1_1, bn2, w2, bn3, shortcut=True):
    hp = jax.lax.Precision.HIGHEST
    dn = ("NCHW", "OIHW", "NCHW")

    def bn_apply(y, p):
        g, b, m, v = p
        scale = (g / jnp.sqrt(v + _BN_EPS)).reshape(1, -1, 1, 1)
        shift = (b - m * g / jnp.sqrt(v + _BN_EPS)).reshape(1, -1, 1, 1)
        return y * scale + shift

    y3 = jax.lax.conv_general_dilated(x, w1_3, (1, 1), ((1, 1), (1, 1)),
                                      dimension_numbers=dn, precision=hp)
    y1 = jax.lax.conv_general_dilated(x, w1_1, (1, 1), ((0, 0), (0, 0)),
                                      dimension_numbers=dn, precision=hp)
    hcv1 = _silu(bn_apply(y3, bn1) + bn_apply(y1, bn2))
    z = jax.lax.conv_general_dilated(hcv1, w2, (1, 1), ((0, 0), (0, 0)),
                                     dimension_numbers=dn, precision=hp)
    z = _silu(bn_apply(z, bn3))
    add = shortcut and (x.shape[1] == w2.shape[0])
    return x + z if add else z


if __name__ == "__main__":
    key = jax.random.PRNGKey(0)
    keys = jax.random.split(key, 7)

    # Small shapes consistent with the module: c1 == c2 so the shortcut is exercised.
    n, c1, c2, h, w = 2, 8, 8, 16, 16
    e = 0.5
    cm = int(c2 * e)  # hidden channels of RepConvN

    x = jax.random.normal(keys[0], (n, c1, h, w), dtype=jnp.float32)

    w1_3 = 0.2 * jax.random.normal(keys[1], (cm, c1, 3, 3), dtype=jnp.float32)
    w1_1 = 0.2 * jax.random.normal(keys[2], (cm, c1, 1, 1), dtype=jnp.float32)
    w2 = 0.2 * jax.random.normal(keys[3], (c2, cm, 1, 1), dtype=jnp.float32)

    def bn_params(k, c):
        k1, k2, k3, k4 = jax.random.split(k, 4)
        gamma = 1.0 + 0.1 * jax.random.normal(k1, (c,), dtype=jnp.float32)
        beta = 0.1 * jax.random.normal(k2, (c,), dtype=jnp.float32)
        mean = 0.1 * jax.random.normal(k3, (c,), dtype=jnp.float32)
        var = jnp.abs(jax.random.normal(k4, (c,), dtype=jnp.float32)) + 0.5
        return gamma, beta, mean, var

    bn1 = bn_params(keys[4], cm)
    bn2 = bn_params(keys[5], cm)
    bn3 = bn_params(keys[6], c2)

    out = rep_nr_bottleneck_base(x, w1_3, bn1, w1_1, bn2, w2, bn3,
                                 shortcut=True, row_tile=8)
    out = jax.block_until_ready(out)

    ref = _ref_forward(x, w1_3, bn1, w1_1, bn2, w2, bn3, shortcut=True)
    assert out.shape == ref.shape, (out.shape, ref.shape)
    err = float(jnp.max(jnp.abs(out - ref)))
    assert err < 5e-3, f"max abs err {err}"

    print("KERNEL_OK")
</pallas_src>

<mosaic_0001>
module attributes {stable_mosaic.version = 11 : i64} {
  func.func @_repnr_bottleneck_kernel(%arg0: i32, %arg1: i32, %arg2: memref<1x1x10x18x8xf32, #tpu.memory_space<vmem>>, %arg3: memref<9x8x4xf32, #tpu.memory_space<vmem>>, %arg4: memref<1x4xf32, #tpu.memory_space<vmem>>, %arg5: memref<4x8xf32, #tpu.memory_space<vmem>>, %arg6: memref<1x8xf32, #tpu.memory_space<vmem>>, %arg7: memref<1x8x16x8xf32, #tpu.memory_space<vmem>>) attributes {dimension_semantics = [#tpu.dimension_semantics<parallel>, #tpu.dimension_semantics<parallel>], iteration_bounds = array<i64: 2, 2>, scalar_prefetch = 0 : i64, scratch_operands = 0 : i64, tpu.core_type = #tpu.core_type<tc>, window_params = [{transform_indices = @transform_0, window_bounds = array<i64: 1, 1, 10, 18, 8>}, {pipeline_mode = #tpu.pipeline_mode<synchronous>, transform_indices = @transform_1, window_bounds = array<i64: 9, 8, 4>}, {pipeline_mode = #tpu.pipeline_mode<synchronous>, transform_indices = @transform_2, window_bounds = array<i64: 1, 4>}, {pipeline_mode = #tpu.pipeline_mode<synchronous>, transform_indices = @transform_3, window_bounds = array<i64: 4, 8>}, {pipeline_mode = #tpu.pipeline_mode<synchronous>, transform_indices = @transform_4, window_bounds = array<i64: 1, 8>}, {transform_indices = @transform_5, window_bounds = array<i64: 1, 8, 16, 8>}]} {
    %cst = arith.constant 0.000000e+00 : f32
    %0 = vector.broadcast %cst : f32 to vector<128x4xf32>
    %c0 = arith.constant 0 : index
    %c0_0 = arith.constant 0 : index
    %c0_1 = arith.constant 0 : index
    %c0_2 = arith.constant 0 : index
    %c0_3 = arith.constant 0 : index
    %1 = vector.load %arg2[%c0, %c0_0, %c0_1, %c0_2, %c0_3] : memref<1x1x10x18x8xf32, #tpu.memory_space<vmem>>, vector<1x1x8x16x8xf32>
    %2 = vector.shape_cast %1 : vector<1x1x8x16x8xf32> to vector<8x16x8xf32>
    %3 = vector.shape_cast %2 : vector<8x16x8xf32> to vector<128x8xf32>
    %c0_4 = arith.constant 0 : index
    %c0_5 = arith.constant 0 : index
    %c0_6 = arith.constant 0 : index
    %4 = vector.load %arg3[%c0_4, %c0_5, %c0_6] : memref<9x8x4xf32, #tpu.memory_space<vmem>>, vector<1x8x4xf32>
    %5 = vector.shape_cast %4 : vector<1x8x4xf32> to vector<8x4xf32>
    %cst_7 = arith.constant dense<0.000000e+00> : vector<128x4xf32>
    %6 = tpu.matmul %3, %5, %cst_7 {dimension_numbers = #tpu.dot_dimension_numbers<[1], [0], [0], [1], [0, 0, 1, 1], [], []>} : vector<128x8xf32>, vector<8x4xf32>, vector<128x4xf32> -> vector<128x4xf32>
    %7 = arith.addf %0, %6 : vector<128x4xf32>
    %c0_8 = arith.constant 0 : index
    %c0_9 = arith.constant 0 : index
    %c0_10 = arith.constant 0 : index
    %c1 = arith.constant 1 : index
    %c0_11 = arith.constant 0 : index
    %8 = vector.load %arg2[%c0_8, %c0_9, %c0_10, %c1, %c0_11] : memref<1x1x10x18x8xf32, #tpu.memory_space<vmem>>, vector<1x1x8x16x8xf32>
    %9 = vector.shape_cast %8 : vector<1x1x8x16x8xf32> to vector<8x16x8xf32>
    %10 = vector.shape_cast %9 : vector<8x16x8xf32> to vector<128x8xf32>
    %c1_12 = arith.constant 1 : index
    %c0_13 = arith.constant 0 : index
    %c0_14 = arith.constant 0 : index
    %11 = vector.load %arg3[%c1_12, %c0_13, %c0_14] : memref<9x8x4xf32, #tpu.memory_space<vmem>>, vector<1x8x4xf32>
    %12 = vector.shape_cast %11 : vector<1x8x4xf32> to vector<8x4xf32>
    %cst_15 = arith.constant dense<0.000000e+00> : vector<128x4xf32>
    %13 = tpu.matmul %10, %12, %cst_15 {dimension_numbers = #tpu.dot_dimension_numbers<[1], [0], [0], [1], [0, 0, 1, 1], [], []>} : vector<128x8xf32>, vector<8x4xf32>, vector<128x4xf32> -> vector<128x4xf32>
    %14 = arith.addf %7, %13 : vector<128x4xf32>
    %c0_16 = arith.constant 0 : index
    %c0_17 = arith.constant 0 : index
    %c0_18 = arith.constant 0 : index
    %c2 = arith.constant 2 : index
    %c0_19 = arith.constant 0 : index
    %15 = vector.load %arg2[%c0_16, %c0_17, %c0_18, %c2, %c0_19] : memref<1x1x10x18x8xf32, #tpu.memory_space<vmem>>, vector<1x1x8x16x8xf32>
    %16 = vector.shape_cast %15 : vector<1x1x8x16x8xf32> to vector<8x16x8xf32>
    %17 = vector.shape_cast %16 : vector<8x16x8xf32> to vector<128x8xf32>
    %c2_20 = arith.constant 2 : index
    %c0_21 = arith.constant 0 : index
    %c0_22 = arith.constant 0 : index
    %18 = vector.load %arg3[%c2_20, %c0_21, %c0_22] : memref<9x8x4xf32, #tpu.memory_space<vmem>>, vector<1x8x4xf32>
    %19 = vector.shape_cast %18 : vector<1x8x4xf32> to vector<8x4xf32>
    %cst_23 = arith.constant dense<0.000000e+00> : vector<128x4xf32>
    %20 = tpu.matmul %17, %19, %cst_23 {dimension_numbers = #tpu.dot_dimension_numbers<[1], [0], [0], [1], [0, 0, 1, 1], [], []>} : vector<128x8xf32>, vector<8x4xf32>, vector<128x4xf32> -> vector<128x4xf32>
    %21 = arith.addf %14, %20 : vector<128x4xf32>
    %c0_24 = arith.constant 0 : index
    %c0_25 = arith.constant 0 : index
    %c1_26 = arith.constant 1 : index
    %c0_27 = arith.constant 0 : index
    %c0_28 = arith.constant 0 : index
    %22 = vector.load %arg2[%c0_24, %c0_25, %c1_26, %c0_27, %c0_28] : memref<1x1x10x18x8xf32, #tpu.memory_space<vmem>>, vector<1x1x8x16x8xf32>
    %23 = vector.shape_cast %22 : vector<1x1x8x16x8xf32> to vector<8x16x8xf32>
    %24 = vector.shape_cast %23 : vector<8x16x8xf32> to vector<128x8xf32>
    %c3 = arith.constant 3 : index
    %c0_29 = arith.constant 0 : index
    %c0_30 = arith.constant 0 : index
    %25 = vector.load %arg3[%c3, %c0_29, %c0_30] : memref<9x8x4xf32, #tpu.memory_space<vmem>>, vector<1x8x4xf32>
    %26 = vector.shape_cast %25 : vector<1x8x4xf32> to vector<8x4xf32>
    %cst_31 = arith.constant dense<0.000000e+00> : vector<128x4xf32>
    %27 = tpu.matmul %24, %26, %cst_31 {dimension_numbers = #tpu.dot_dimension_numbers<[1], [0], [0], [1], [0, 0, 1, 1], [], []>} : vector<128x8xf32>, vector<8x4xf32>, vector<128x4xf32> -> vector<128x4xf32>
    %28 = arith.addf %21, %27 : vector<128x4xf32>
    %c0_32 = arith.constant 0 : index
    %c0_33 = arith.constant 0 : index
    %c1_34 = arith.constant 1 : index
    %c1_35 = arith.constant 1 : index
    %c0_36 = arith.constant 0 : index
    %29 = vector.load %arg2[%c0_32, %c0_33, %c1_34, %c1_35, %c0_36] : memref<1x1x10x18x8xf32, #tpu.memory_space<vmem>>, vector<1x1x8x16x8xf32>
    %30 = vector.shape_cast %29 : vector<1x1x8x16x8xf32> to vector<8x16x8xf32>
    %31 = vector.shape_cast %30 : vector<8x16x8xf32> to vector<128x8xf32>
    %c4 = arith.constant 4 : index
    %c0_37 = arith.constant 0 : index
    %c0_38 = arith.constant 0 : index
    %32 = vector.load %arg3[%c4, %c0_37, %c0_38] : memref<9x8x4xf32, #tpu.memory_space<vmem>>, vector<1x8x4xf32>
    %33 = vector.shape_cast %32 : vector<1x8x4xf32> to vector<8x4xf32>
    %cst_39 = arith.constant dense<0.000000e+00> : vector<128x4xf32>
    %34 = tpu.matmul %31, %33, %cst_39 {dimension_numbers = #tpu.dot_dimension_numbers<[1], [0], [0], [1], [0, 0, 1, 1], [], []>} : vector<128x8xf32>, vector<8x4xf32>, vector<128x4xf32> -> vector<128x4xf32>
    %35 = arith.addf %28, %34 : vector<128x4xf32>
    %c0_40 = arith.constant 0 : index
    %c0_41 = arith.constant 0 : index
    %c1_42 = arith.constant 1 : index
    %c2_43 = arith.constant 2 : index
    %c0_44 = arith.constant 0 : index
    %36 = vector.load %arg2[%c0_40, %c0_41, %c1_42, %c2_43, %c0_44] : memref<1x1x10x18x8xf32, #tpu.memory_space<vmem>>, vector<1x1x8x16x8xf32>
    %37 = vector.shape_cast %36 : vector<1x1x8x16x8xf32> to vector<8x16x8xf32>
    %38 = vector.shape_cast %37 : vector<8x16x8xf32> to vector<128x8xf32>
    %c5 = arith.constant 5 : index
    %c0_45 = arith.constant 0 : index
    %c0_46 = arith.constant 0 : index
    %39 = vector.load %arg3[%c5, %c0_45, %c0_46] : memref<9x8x4xf32, #tpu.memory_space<vmem>>, vector<1x8x4xf32>
    %40 = vector.shape_cast %39 : vector<1x8x4xf32> to vector<8x4xf32>
    %cst_47 = arith.constant dense<0.000000e+00> : vector<128x4xf32>
    %41 = tpu.matmul %38, %40, %cst_47 {dimension_numbers = #tpu.dot_dimension_numbers<[1], [0], [0], [1], [0, 0, 1, 1], [], []>} : vector<128x8xf32>, vector<8x4xf32>, vector<128x4xf32> -> vector<128x4xf32>
    %42 = arith.addf %35, %41 : vector<128x4xf32>
    %c0_48 = arith.constant 0 : index
    %c0_49 = arith.constant 0 : index
    %c2_50 = arith.constant 2 : index
    %c0_51 = arith.constant 0 : index
    %c0_52 = arith.constant 0 : index
    %43 = vector.load %arg2[%c0_48, %c0_49, %c2_50, %c0_51, %c0_52] : memref<1x1x10x18x8xf32, #tpu.memory_space<vmem>>, vector<1x1x8x16x8xf32>
    %44 = vector.shape_cast %43 : vector<1x1x8x16x8xf32> to vector<8x16x8xf32>
    %45 = vector.shape_cast %44 : vector<8x16x8xf32> to vector<128x8xf32>
    %c6 = arith.constant 6 : index
    %c0_53 = arith.constant 0 : index
    %c0_54 = arith.constant 0 : index
    %46 = vector.load %arg3[%c6, %c0_53, %c0_54] : memref<9x8x4xf32, #tpu.memory_space<vmem>>, vector<1x8x4xf32>
    %47 = vector.shape_cast %46 : vector<1x8x4xf32> to vector<8x4xf32>
    %cst_55 = arith.constant dense<0.000000e+00> : vector<128x4xf32>
    %48 = tpu.matmul %45, %47, %cst_55 {dimension_numbers = #tpu.dot_dimension_numbers<[1], [0], [0], [1], [0, 0, 1, 1], [], []>} : vector<128x8xf32>, vector<8x4xf32>, vector<128x4xf32> -> vector<128x4xf32>
    %49 = arith.addf %42, %48 : vector<128x4xf32>
    %c0_56 = arith.constant 0 : index
    %c0_57 = arith.constant 0 : index
    %c2_58 = arith.constant 2 : index
    %c1_59 = arith.constant 1 : index
    %c0_60 = arith.constant 0 : index
    %50 = vector.load %arg2[%c0_56, %c0_57, %c2_58, %c1_59, %c0_60] : memref<1x1x10x18x8xf32, #tpu.memory_space<vmem>>, vector<1x1x8x16x8xf32>
    %51 = vector.shape_cast %50 : vector<1x1x8x16x8xf32> to vector<8x16x8xf32>
    %52 = vector.shape_cast %51 : vector<8x16x8xf32> to vector<128x8xf32>
    %c7 = arith.constant 7 : index
    %c0_61 = arith.constant 0 : index
    %c0_62 = arith.constant 0 : index
    %53 = vector.load %arg3[%c7, %c0_61, %c0_62] : memref<9x8x4xf32, #tpu.memory_space<vmem>>, vector<1x8x4xf32>
    %54 = vector.shape_cast %53 : vector<1x8x4xf32> to vector<8x4xf32>
    %cst_63 = arith.constant dense<0.000000e+00> : vector<128x4xf32>
    %55 = tpu.matmul %52, %54, %cst_63 {dimension_numbers = #tpu.dot_dimension_numbers<[1], [0], [0], [1], [0, 0, 1, 1], [], []>} : vector<128x8xf32>, vector<8x4xf32>, vector<128x4xf32> -> vector<128x4xf32>
    %56 = arith.addf %49, %55 : vector<128x4xf32>
    %c0_64 = arith.constant 0 : index
    %c0_65 = arith.constant 0 : index
    %c2_66 = arith.constant 2 : index
    %c2_67 = arith.constant 2 : index
    %c0_68 = arith.constant 0 : index
    %57 = vector.load %arg2[%c0_64, %c0_65, %c2_66, %c2_67, %c0_68] : memref<1x1x10x18x8xf32, #tpu.memory_space<vmem>>, vector<1x1x8x16x8xf32>
    %58 = vector.shape_cast %57 : vector<1x1x8x16x8xf32> to vector<8x16x8xf32>
    %59 = vector.shape_cast %58 : vector<8x16x8xf32> to vector<128x8xf32>
    %c8 = arith.constant 8 : index
    %c0_69 = arith.constant 0 : index
    %c0_70 = arith.constant 0 : index
    %60 = vector.load %arg3[%c8, %c0_69, %c0_70] : memref<9x8x4xf32, #tpu.memory_space<vmem>>, vector<1x8x4xf32>
    %61 = vector.shape_cast %60 : vector<1x8x4xf32> to vector<8x4xf32>
    %cst_71 = arith.constant dense<0.000000e+00> : vector<128x4xf32>
    %62 = tpu.matmul %59, %61, %cst_71 {dimension_numbers = #tpu.dot_dimension_numbers<[1], [0], [0], [1], [0, 0, 1, 1], [], []>} : vector<128x8xf32>, vector<8x4xf32>, vector<128x4xf32> -> vector<128x4xf32>
    %63 = arith.addf %56, %62 : vector<128x4xf32>
    %c0_72 = arith.constant 0 : index
    %c0_73 = arith.constant 0 : index
    %64 = vector.load %arg4[%c0_72, %c0_73] : memref<1x4xf32, #tpu.memory_space<vmem>>, vector<1x4xf32>
    %65 = vector.broadcast %64 : vector<1x4xf32> to vector<128x4xf32>
    %66 = arith.addf %63, %65 : vector<128x4xf32>
    %cst_74 = arith.constant 0.000000e+00 : f32
    %67 = vector.broadcast %cst_74 : f32 to vector<128x4xf32>
    %68 = arith.subf %67, %66 : vector<128x4xf32>
    %69 = math.exp %68 : vector<128x4xf32>
    %cst_75 = arith.constant 1.000000e+00 : f32
    %70 = vector.broadcast %cst_75 : f32 to vector<128x4xf32>
    %71 = arith.addf %70, %69 : vector<128x4xf32>
    %72 = arith.divf %66, %71 : vector<128x4xf32>
    %c0_76 = arith.constant 0 : index
    %c0_77 = arith.constant 0 : index
    %73 = vector.load %arg5[%c0_76, %c0_77] : memref<4x8xf32, #tpu.memory_space<vmem>>, vector<4x8xf32>
    %cst_78 = arith.constant dense<0.000000e+00> : vector<128x8xf32>
    %74 = tpu.matmul %72, %73, %cst_78 {dimension_numbers = #tpu.dot_dimension_numbers<[1], [0], [0], [1], [0, 0, 1, 1], [], []>} : vector<128x4xf32>, vector<4x8xf32>, vector<128x8xf32> -> vector<128x8xf32>
    %c0_79 = arith.constant 0 : index
    %c0_80 = arith.constant 0 : index
    %75 = vector.load %arg6[%c0_79, %c0_80] : memref<1x8xf32, #tpu.memory_space<vmem>>, vector<1x8xf32>
    %76 = vector.broadcast %75 : vector<1x8xf32> to vector<128x8xf32>
    %77 = arith.addf %74, %76 : vector<128x8xf32>
    %cst_81 = arith.constant 0.000000e+00 : f32
    %78 = vector.broadcast %cst_81 : f32 to vector<128x8xf32>
    %79 = arith.subf %78, %77 : vector<128x8xf32>
    %80 = math.exp %79 : vector<128x8xf32>
    %cst_82 = arith.constant 1.000000e+00 : f32
    %81 = vector.broadcast %cst_82 : f32 to vector<128x8xf32>
    %82 = arith.addf %81, %80 : vector<128x8xf32>
    %83 = arith.divf %77, %82 : vector<128x8xf32>
    %c0_83 = arith.constant 0 : index
    %c0_84 = arith.constant 0 : index
    %c1_85 = arith.constant 1 : index
    %c1_86 = arith.constant 1 : index
    %c0_87 = arith.constant 0 : index
    %84 = vector.load %arg2[%c0_83, %c0_84, %c1_85, %c1_86, %c0_87] : memref<1x1x10x18x8xf32, #tpu.memory_space<vmem>>, vector<1x1x8x16x8xf32>
    %85 = vector.shape_cast %84 : vector<1x1x8x16x8xf32> to vector<8x16x8xf32>
    %86 = vector.shape_cast %85 : vector<8x16x8xf32> to vector<128x8xf32>
    %87 = arith.addf %83, %86 : vector<128x8xf32>
    %88 = vector.shape_cast %87 : vector<128x8xf32> to vector<8x16x8xf32>
    %c0_88 = arith.constant 0 : index
    %c0_89 = arith.constant 0 : index
    %c0_90 = arith.constant 0 : index
    %c0_91 = arith.constant 0 : index
    %89 = vector.load %arg7[%c0_88, %c0_89, %c0_90, %c0_91] : memref<1x8x16x8xf32, #tpu.memory_space<vmem>>, vector<1x8x16x8xf32>
    %90 = vector.shape_cast %89 : vector<1x8x16x8xf32> to vector<8x16x8xf32>
    %91 = vector.shape_cast %88 : vector<8x16x8xf32> to vector<1x8x16x8xf32>
    tpu.vector_store %arg7[%c0_88, %c0_89, %c0_90, %c0_91], %91 {strides = array<i32>} : memref<1x8x16x8xf32, #tpu.memory_space<vmem>>, vector<1x8x16x8xf32>,
    return
  }
  func.func @transform_0(%arg0: i32, %arg1: i32) -> (i32, i32, i32, i32, i32) {
    %c0_i32 = arith.constant 0 : i32
    %c0_i32_0 = arith.constant 0 : i32
    %c0_i32_1 = arith.constant 0 : i32
    %c0_i32_2 = arith.constant 0 : i32
    return %arg0, %arg1, %c0_i32, %c0_i32_0, %c0_i32_1 : i32, i32, i32, i32, i32
  }
  func.func @transform_1(%arg0: i32, %arg1: i32) -> (i32, i32, i32) {
    %c0_i32 = arith.constant 0 : i32
    %c0_i32_0 = arith.constant 0 : i32
    %c0_i32_1 = arith.constant 0 : i32
    %c0_i32_2 = arith.constant 0 : i32
    return %c0_i32, %c0_i32_0, %c0_i32_1 : i32, i32, i32
  }
  func.func @transform_2(%arg0: i32, %arg1: i32) -> (i32, i32) {
    %c0_i32 = arith.constant 0 : i32
    %c0_i32_0 = arith.constant 0 : i32
    %c0_i32_1 = arith.constant 0 : i32
    return %c0_i32, %c0_i32_0 : i32, i32
  }
  func.func @transform_3(%arg0: i32, %arg1: i32) -> (i32, i32) {
    %c0_i32 = arith.constant 0 : i32
    %c0_i32_0 = arith.constant 0 : i32
    %c0_i32_1 = arith.constant 0 : i32
    return %c0_i32, %c0_i32_0 : i32, i32
  }
  func.func @transform_4(%arg0: i32, %arg1: i32) -> (i32, i32) {
    %c0_i32 = arith.constant 0 : i32
    %c0_i32_0 = arith.constant 0 : i32
    %c0_i32_1 = arith.constant 0 : i32
    return %c0_i32, %c0_i32_0 : i32, i32
  }
  func.func @transform_5(%arg0: i32, %arg1: i32) -> (i32, i32, i32, i32) {
    %c0_i32 = arith.constant 0 : i32
    %c0_i32_0 = arith.constant 0 : i32
    %c0_i32_1 = arith.constant 0 : i32
    return %arg0, %arg1, %c0_i32, %c0_i32_0 : i32, i32, i32, i32
  }
}

</mosaic_0001>

<llo_original>
// kernel: tpu_custom_call.1
$region0: #{tpu_custom_call.1}
  #allocation0 [shape = 'u32[]', space=smem, size = 0x4, offset = 0x4, fixed_abs, tag = 'smem constant byte address 0x4 - core index']
  #allocation1 [shape = 'u32[144,128]{1,0:T(1,128)}', space=vmem, size = 0x12000, scoped, tag = 'internal scratch']
  %s0 = inlined_call_operand.vmem [shape: f32[2,2,10,18,8], index: 0, kind: input, shape index: {}]
  %s1 = inlined_call_operand.vmem [shape: f32[9,8,4], index: 1, kind: input, shape index: {}]
  %s2 = inlined_call_operand.vmem [shape: f32[1,4], index: 2, kind: input, shape index: {}]
  %s3 = inlined_call_operand.vmem [shape: f32[4,8], index: 3, kind: input, shape index: {}]
  %s4 = inlined_call_operand.vmem [shape: f32[1,8], index: 4, kind: input, shape index: {}]
  %s5 = inlined_call_operand.vmem [shape: f32[2,16,16,8], index: 5, kind: output, shape index: {}]
  %s6 = sld [smem:[#allocation0]]
  $region53: #{tpu_custom_call.1} parent=0
    _
  %s8 = ssub.s32 1, %s6
  %s9 = scalar_select 0, %s8, %s6
  loop: start=0, step=1, limit=6
  $region2: #{tpu_custom_call.1} parent=0 // loop_pre_header
    _
  $region3: #{tpu_custom_call.1} parent=0 // loop_header
    %s11 = sphi 0, %s15
    %p12 = scmp.ge.s32.totalorder %s11, 6
    %s18 = sphi 0, %s30
    %s19 = sphi 0, %s26
    %s20 = sphi 0, %s18
    %s21 = sphi 0, %s19
    %s22 = sphi 0, %s20
    %s23 = sphi 0, %s21
    %s35 = sphi 0, %s37
    %s38 = sphi 0, %s35
    %s39 = sphi 0, %s38
    %s55 = sphi 0, %s39
    %s59 = sphi 0, %s59
    %s61 = sphi 0, %s59
    %s62 = sphi 0, %s61
    %s76 = sphi 0, %s62
    %s80 = sphi 0, %s80
    %s82 = sphi 0, %s80
    %s83 = sphi 0, %s82
    %s97 = sphi 0, %s83
    %s101 = sphi 0, %s101
    %s103 = sphi 0, %s101
    %s104 = sphi 0, %s103
    %s118 = sphi 0, %s104
    %s122 = sphi 0, %s122
    %s124 = sphi 0, %s122
    %s125 = sphi 0, %s124
    %s139 = sphi 0, %s125
    %s147 = sphi 0, %s149
    %s150 = sphi 0, %s147
    %s151 = sphi 0, %s150
    %s167 = sphi 0, %s151
  $region4: #{tpu_custom_call.1} parent=0 // loop_header_branch
    %14 = sbr.rel (%p12) target = $region8
  $region5: #{tpu_custom_call.1} parent=0 // loop_body
    %s16 = ssub.s32 %s11, 1
    %s17 = ssub.s32 %s11, 2
    %s24 = sadd.s32 1, %s19
    %p25 = scmp.ge.s32.totalorder %s24, 2
    %s26 = scalar_select %p25, 0, %s24
    %s27 = sadd.s32 1, %s18
    %s28 = scalar_select %p25, %s27, %s18
    %p29 = scmp.ge.s32.totalorder %s28, 2
    %s30 = scalar_select %p29, 0, %s28
    %s31 = ssub.s32 %s18, %s30
    %s32 = ssub.s32 %s19, %s26
    %s33 = sor.u32 %s31, %s32
    %p34 = scmp.eq.s32.totalorder %s33, 0
    %s36 = sadd.s32 %s35, 1
    %s37 = scalar_select %p34, %s35, %s36
    %p40 = pneg %p34
    %p41 = scmp.eq.s32.totalorder %s11, 3
    %p42 = por %p40, %p41
    %p43 = scmp.ne.s32.totalorder %s35, %s38
    %p44 = scmp.eq.s32.totalorder %s11, 0
    %p45 = por %p43, %p44
    %p46 = scmp.ne.s32.totalorder %s35, %s38
    %p47 = scmp.eq.s32.totalorder %s16, 3
    %p48 = por %p46, %p47
    %p49 = scmp.ne.s32.totalorder %s38, %s39
    %p50 = scmp.eq.s32.totalorder %s16, 0
    %p51 = por %p49, %p50
    %p52 = scmp.ne.s32.totalorder %s38, %s39
    %p53 = scmp.eq.s32.totalorder %s17, 3
    %p54 = por %p52, %p53
    %p56 = scmp.ne.s32.totalorder %s39, %s55
    %p57 = scmp.eq.s32.totalorder %s17, 0
    %p58 = por %p56, %p57
    %s60 = sadd.s32 %s59, 1
    %p63 = scmp.eq.s32.totalorder %s11, 3
    %p64 = scmp.ne.s32.totalorder %s59, %s61
    %p65 = scmp.eq.s32.totalorder %s11, 0
    %p66 = por %p64, %p65
    %p67 = scmp.ne.s32.totalorder %s59, %s61
    %p68 = scmp.eq.s32.totalorder %s16, 3
    %p69 = por %p67, %p68
    %p70 = scmp.ne.s32.totalorder %s61, %s62
    %p71 = scmp.eq.s32.totalorder %s16, 0
    %p72 = por %p70, %p71
    %p73 = scmp.ne.s32.totalorder %s61, %s62
    %p74 = scmp.eq.s32.totalorder %s17, 3
    %p75 = por %p73, %p74
    %p77 = scmp.ne.s32.totalorder %s62, %s76
    %p78 = scmp.eq.s32.totalorder %s17, 0
    %p79 = por %p77, %p78
    %s81 = sadd.s32 %s80, 1
    %p84 = scmp.eq.s32.totalorder %s11, 3
    %p85 = scmp.ne.s32.totalorder %s80, %s82
    %p86 = scmp.eq.s32.totalorder %s11, 0
    %p87 = por %p85, %p86
    %p88 = scmp.ne.s32.totalorder %s80, %s82
    %p89 = scmp.eq.s32.totalorder %s16, 3
    %p90 = por %p88, %p89
    %p91 = scmp.ne.s32.totalorder %s82, %s83
    %p92 = scmp.eq.s32.totalorder %s16, 0
    %p93 = por %p91, %p92
    %p94 = scmp.ne.s32.totalorder %s82, %s83
    %p95 = scmp.eq.s32.totalorder %s17, 3
    %p96 = por %p94, %p95
    %p98 = scmp.ne.s32.totalorder %s83, %s97
    %p99 = scmp.eq.s32.totalorder %s17, 0
    %p100 = por %p98, %p99
    %s102 = sadd.s32 %s101, 1
    %p105 = scmp.eq.s32.totalorder %s11, 3
    %p106 = scmp.ne.s32.totalorder %s101, %s103
    %p107 = scmp.eq.s32.totalorder %s11, 0
    %p108 = por %p106, %p107
    %p109 = scmp.ne.s32.totalorder %s101, %s103
    %p110 = scmp.eq.s32.totalorder %s16, 3
    %p111 = por %p109, %p110
    %p112 = scmp.ne.s32.totalorder %s103, %s104
    %p113 = scmp.eq.s32.totalorder %s16, 0
    %p114 = por %p112, %p113
    %p115 = scmp.ne.s32.totalorder %s103, %s104
    %p116 = scmp.eq.s32.totalorder %s17, 3
    %p117 = por %p115, %p116
    %p119 = scmp.ne.s32.totalorder %s104, %s118
    %p120 = scmp.eq.s32.totalorder %s17, 0
    %p121 = por %p119, %p120
    %s123 = sadd.s32 %s122, 1
    %p126 = scmp.eq.s32.totalorder %s11, 3
    %p127 = scmp.ne.s32.totalorder %s122, %s124
    %p128 = scmp.eq.s32.totalorder %s11, 0
    %p129 = por %p127, %p128
    %p130 = scmp.ne.s32.totalorder %s122, %s124
    %p131 = scmp.eq.s32.totalorder %s16, 3
    %p132 = por %p130, %p131
    %p133 = scmp.ne.s32.totalorder %s124, %s125
    %p134 = scmp.eq.s32.totalorder %s16, 0
    %p135 = por %p133, %p134
    %p136 = scmp.ne.s32.totalorder %s124, %s125
    %p137 = scmp.eq.s32.totalorder %s17, 3
    %p138 = por %p136, %p137
    %p140 = scmp.ne.s32.totalorder %s125, %s139
    %p141 = scmp.eq.s32.totalorder %s17, 0
    %p142 = por %p140, %p141
    %s143 = ssub.s32 %s18, %s30
    %s144 = ssub.s32 %s19, %s26
    %s145 = sor.u32 %s143, %s144
    %p146 = scmp.eq.s32.totalorder %s145, 0
    %s148 = sadd.s32 %s147, 1
    %s149 = scalar_select %p146, %s147, %s148
    %p152 = pneg %p146
    %p153 = scmp.eq.s32.totalorder %s11, 3
    %p154 = por %p152, %p153
    %p155 = scmp.ne.s32.totalorder %s147, %s150
    %p156 = scmp.eq.s32.totalorder %s11, 0
    %p157 = por %p155, %p156
    %p158 = scmp.ne.s32.totalorder %s147, %s150
    %p159 = scmp.eq.s32.totalorder %s16, 3
    %p160 = por %p158, %p159
    %p161 = scmp.ne.s32.totalorder %s150, %s151
    %p162 = scmp.eq.s32.totalorder %s16, 0
    %p163 = por %p161, %p162
    %p164 = scmp.ne.s32.totalorder %s150, %s151
    %p165 = scmp.eq.s32.totalorder %s17, 3
    %p166 = por %p164, %p165
    %p168 = scmp.ne.s32.totalorder %s151, %s167
    %p169 = scmp.eq.s32.totalorder %s17, 0
    %p170 = por %p168, %p169
    %p171 = scmp.le.s32.totalorder 1, %s11
    %p172 = scmp.lt.s32.totalorder %s11, 5
    %p173 = pnand %p171, %p172
    %p174 = pneg %p173
    // Predicated region
    $region9: #{tpu_custom_call.1} parent=5 // pred_check
      _
    $region10: #{tpu_custom_call.1} parent=5 // pred_check_branch
      %176 = sbr.rel (%p173) target = $region12
    $region11: #{tpu_custom_call.1} parent=5 // pred_region
      %s177 = ssub.s32 %s11, 1
      // Predicated region
      $region13: #{tpu_custom_call.1} parent=11 // pred_check
        %p178 = pneg %p72
      $region14: #{tpu_custom_call.1} parent=11 // pred_check_branch
        %180 = sbr.rel (%p178) target = $region16
      $region15: #{tpu_custom_call.1} parent=11 // pred_region
        _
      $region16: #{tpu_custom_call.1} parent=11 // pred_fallthru
        _
      // Predicated region
      $region17: #{tpu_custom_call.1} parent=11 // pred_check
        %p181 = pneg %p93
      $region18: #{tpu_custom_call.1} parent=11 // pred_check_branch
        %183 = sbr.rel (%p181) target = $region20
      $region19: #{tpu_custom_call.1} parent=11 // pred_region
        _
      $region20: #{tpu_custom_call.1} parent=11 // pred_fallthru
        _
      // Predicated region
      $region21: #{tpu_custom_call.1} parent=11 // pred_check
        %p184 = pneg %p114
      $region22: #{tpu_custom_call.1} parent=11 // pred_check_branch
        %186 = sbr.rel (%p184) target = $region24
      $region23: #{tpu_custom_call.1} parent=11 // pred_region
        _
      $region24: #{tpu_custom_call.1} parent=11 // pred_fallthru
        _
      // Predicated region
      $region25: #{tpu_custom_call.1} parent=11 // pred_check
        %p187 = pneg %p135
      $region26: #{tpu_custom_call.1} parent=11 // pred_check_branch
        %189 = sbr.rel (%p187) target = $region28
      $region27: #{tpu_custom_call.1} parent=11 // pred_region
        _
      $region28: #{tpu_custom_call.1} parent=11 // pred_fallthru
        _
    $region12: #{tpu_custom_call.1} parent=5 // pred_fallthru
      _
    %p190 = scmp.lt.s32.totalorder %s11, 4
    // Predicated region
    $region29: #{tpu_custom_call.1} parent=5 // pred_check
      %p191 = pneg %p190
    $region30: #{tpu_custom_call.1} parent=5 // pred_check_branch
      %193 = sbr.rel (%p191) target = $region32
    $region31: #{tpu_custom_call.1} parent=5 // pred_region
      // Predicated region
      $region33: #{tpu_custom_call.1} parent=31 // pred_check
        %p194 = pneg %p45
      $region34: #{tpu_custom_call.1} parent=31 // pred_check_branch
        %196 = sbr.rel (%p194) target = $region36
      $region35: #{tpu_custom_call.1} parent=31 // pred_region
        %p197 = scmp.lt.s32.totalorder %s18, 1
        %s198 = scalar_select %p197, %s18, 1
        %p199 = scmp.lt.s32.totalorder %s19, 1
        %s200 = scalar_select %p199, %s19, 1
        %s201 = smul.addr %s200, 30
        %s202 = smul.addr %s198, 60
        %s203 = sadd.s32 %s201, %s202
        %s204 = smul.addr %s203, 8
        %s205 = scalar_lea.vmem %s0, %s204
      $region36: #{tpu_custom_call.1} parent=31 // pred_fallthru
        _
    $region32: #{tpu_custom_call.1} parent=5 // pred_fallthru
      _
    %p206 = scmp.le.s32.totalorder 1, %s11
    %p207 = scmp.lt.s32.totalorder %s11, 5
    %p208 = pnand %p206, %p207
    %p209 = pneg %p208
    // Predicated region
    $region37: #{tpu_custom_call.1} parent=5 // pred_check
      _
    $region38: #{tpu_custom_call.1} parent=5 // pred_check_branch
      %211 = sbr.rel (%p208) target = $region40
    $region39: #{tpu_custom_call.1} parent=5 // pred_region
      %s212 = ssub.s32 %s11, 1
      %p213 = scmp.lt.s32.totalorder %s20, 1
      %s214 = scalar_select %p213, %s20, 1
      %p215 = scmp.lt.s32.totalorder %s21, 1
      %s216 = scalar_select %p215, %s21, 1
      %s217 = smul.addr %s216, 30
      %s218 = smul.addr %s214, 60
      %s219 = sadd.s32 %s217, %s218
      %s220 = smul.addr %s219, 8
      %s221 = scalar_lea.vmem %s0, %s220
      %p222 = pneg %p51
      %p223 = pneg %p48
      %p224 = pneg %p72
      %p225 = pneg %p69
      %p226 = pneg %p93
      %p227 = pneg %p90
      %p228 = pneg %p114
      %p229 = pneg %p111
      %p230 = pneg %p135
      %p231 = pneg %p132
      %p232 = pneg %p163
      %p233 = pneg %p160
      %s234 = smul.u32 8, %s21
      %p235 = scmp.lt.s32.totalorder %s20, 1
      %s236 = scalar_select %p235, %s20, 1
      %p237 = scmp.lt.s32.totalorder %s234, 15
      %s238 = scalar_select %p237, %s234, 15
      %s239 = smul.addr %s238, 2
      %s240 = smul.addr %s236, 32
      %s241 = sadd.s32 %s239, %s240
      %s242 = smul.addr %s241, 8
      %s243 = scalar_lea.vmem %s5, %s242
      %p244 = scmp.lt.s32.totalorder %s20, 1
      %s245 = scalar_select %p244, %s20, 1
      %p246 = scmp.lt.s32.totalorder %s21, 1
      %s247 = scalar_select %p246, %s21, 1
      %s248 = smul.addr %s247, 30
      %s249 = smul.addr %s245, 60
      %s250 = sadd.s32 %s248, %s249
      %s251 = smul.addr %s250, 8
      %s252 = scalar_lea.vmem %s0, %s251
      %s253 = smul.u32 8, %s21
      %p254 = scmp.lt.s32.totalorder %s20, 1
      %s255 = scalar_select %p254, %s20, 1
      %p256 = scmp.lt.s32.totalorder %s253, 15
      %s257 = scalar_select %p256, %s253, 15
      %s258 = smul.addr %s257, 2
      %s259 = smul.addr %s255, 32
      %s260 = sadd.s32 %s258, %s259
      %s261 = smul.addr %s260, 8
      %s262 = scalar_lea.vmem %s5, %s261
      %s263 = smul.u32 8, %s21
      %v264 = vld [vmem:[%s252] sm:$0xff]
      %v265 = vld [vmem:[%s252 + $0x8] sm:$0xff]
      %v266 = vld [vmem:[%s252 + $0x18] sm:$0xff]
      %v267 = vld [vmem:[%s252 + $0x20] sm:$0xff]
      %v268 = vld [vmem:[%s252 + $0x30] sm:$0xff]
      %v269 = vld [vmem:[%s252 + $0x38] sm:$0xff]
      %v270 = vld [vmem:[%s252 + $0x48] sm:$0xff]
      %v271 = vld [vmem:[%s252 + $0x50] sm:$0xff]
      %v272 = vld [vmem:[%s252 + $0x60] sm:$0xff]
      %v273 = vld [vmem:[%s252 + $0x68] sm:$0xff]
      %v274 = vld [vmem:[%s252 + $0x78] sm:$0xff]
      %v275 = vld [vmem:[%s252 + $0x80] sm:$0xff]
      %v276 = vld [vmem:[%s252 + $0x90] sm:$0xff]
      %v277 = vld [vmem:[%s252 + $0x98] sm:$0xff]
      %v278 = vld [vmem:[%s252 + $0xa8] sm:$0xff]
      %v279 = vld [vmem:[%s252 + $0xb0] sm:$0xff]
      %v280 = vld [vmem:[%s1] sm:$0xff]
      %v281 = vld [vmem:[%s252 + $0x1] sm:$0xff]
      %v282 = vld [vmem:[%s252 + $0x9] sm:$0xff]
      %v283 = vld [vmem:[%s252 + $0x19] sm:$0xff]
      %v284 = vld [vmem:[%s252 + $0x21] sm:$0xff]
      %v285 = vld [vmem:[%s252 + $0x31] sm:$0xff]
      %v286 = vld [vmem:[%s252 + $0x39] sm:$0xff]
      %v287 = vld [vmem:[%s252 + $0x49] sm:$0xff]
      %v288 = vld [vmem:[%s252 + $0x51] sm:$0xff]
      %v289 = vld [vmem:[%s252 + $0x61] sm:$0xff]
      %v290 = vld [vmem:[%s252 + $0x69] sm:$0xff]
      %v291 = vld [vmem:[%s252 + $0x79] sm:$0xff]
      %v292 = vld [vmem:[%s252 + $0x81] sm:$0xff]
      %v293 = vld [vmem:[%s252 + $0x91] sm:$0xff]
      %v294 = vld [vmem:[%s252 + $0x99] sm:$0xff]
      %v295 = vld [vmem:[%s252 + $0xa9] sm:$0xff]
      %v296 = vld [vmem:[%s252 + $0xb1] sm:$0xff]
      %s297 = scalar_lea.vmem %s1, 8
      %v298 = vld [vmem:[%s297] sm:$0xff]
      %vm299 = vcmask 64512
      %v301 = vsel %vm299, %v281, 0
      %v304 = vsel %vm299, %v282, 0
      %v307 = vsel %vm299, %v283, 0
      %v310 = vsel %vm299, %v284, 0
      %v313 = vsel %vm299, %v285, 0
      %v316 = vsel %vm299, %v286, 0
      %v319 = vsel %vm299, %v287, 0
      %v322 = vsel %vm299, %v288, 0
      %v325 = vsel %vm299, %v289, 0
      %v328 = vsel %vm299, %v290, 0
      %v331 = vsel %vm299, %v291, 0
      %v334 = vsel %vm299, %v292, 0
      %v337 = vsel %vm299, %v293, 0
      %v340 = vsel %vm299, %v294, 0
      %v343 = vsel %vm299, %v295, 0
      %v346 = vsel %vm299, %v296, 0
      %348 = vmatprep.subr.mxu0 0.0
      %349 = vmatpush1.msra.mxu0 %v298
      %350 = vmatprep.subr.mxu0 0.0
      %351 = vmatpush1.msra.mxu0 0.0
      %352 = vmatprep.subr.mxu0 0.0
      %353 = vmatpush1.msra.mxu0 0.0
      %354 = vmatprep.subr.mxu0 0.0
      %355 = vmatpush1.msra.mxu0 0.0
      %356 = vmatprep.subr.mxu0 0.0
      %357 = vmatpush1.msra.mxu0 0.0
      %358 = vmatprep.subr.mxu0 0.0
      %359 = vmatpush1.msra.mxu0 0.0
      %360 = vmatprep.subr.mxu0 0.0
      %361 = vmatpush1.msra.mxu0 0.0
      %362 = vmatprep.subr.mxu0 0.0
      %363 = vmatpush1.msra.mxu0 0.0
      %364 = vmatprep.subr.mxu0 0.0
      %365 = vmatpush1.msra.mxu0 0.0
      %366 = vmatprep.subr.mxu0 0.0
      %367 = vmatpush1.msra.mxu0 0.0
      %368 = vmatprep.subr.mxu0 0.0
      %369 = vmatpush1.msra.mxu0 0.0
      %370 = vmatprep.subr.mxu0 0.0
      %371 = vmatpush1.msra.mxu0 0.0
      %372 = vmatprep.subr.mxu0 0.0
      %373 = vmatpush1.msra.mxu0 0.0
      %374 = vmatprep.subr.mxu0 0.0
      %375 = vmatpush1.msra.mxu0 0.0
      %376 = vmatprep.subr.mxu0 0.0
      %377 = vmatpush1.msra.mxu0 0.0
      %378 = vmatprep.subr.mxu0 0.0
      %379 = vmatpush1.msra.mxu0 0.0
      %380 = vmatprep.subr.mxu0 0.0
      %381 = vmatpush1.msra.mxu0 0.0
      %382 = vmatprep.subr.mxu0 0.0
      %383 = vmatpush1.msra.mxu0 0.0
      %384 = vmatprep.subr.mxu0 0.0
      %385 = vmatpush1.msra.mxu0 0.0
      %386 = vmatprep.subr.mxu0 0.0
      %387 = vmatpush1.msra.mxu0 0.0
      %388 = vmatprep.subr.mxu0 0.0
      %389 = vmatpush1.msra.mxu0 0.0
      %390 = vmatprep.subr.mxu0 0.0
      %391 = vmatpush1.msra.mxu0 0.0
      %392 = vmatprep.subr.mxu0 0.0
      %393 = vmatpush1.msra.mxu0 0.0
      %394 = vmatprep.subr.mxu0 0.0
      %395 = vmatpush1.msra.mxu0 0.0
      %396 = vmatprep.subr.mxu0 0.0
      %397 = vmatpush1.msra.mxu0 0.0
      %398 = vmatprep.subr.mxu0 0.0
      %399 = vmatpush1.msra.mxu0 0.0
      %400 = vmatprep.subr.mxu0 0.0
      %401 = vmatpush1.msra.mxu0 0.0
      %402 = vmatprep.subr.mxu0 0.0
      %403 = vmatpush1.msra.mxu0 0.0
      %404 = vmatprep.subr.mxu0 0.0
      %405 = vmatpush1.msra.mxu0 0.0
      %406 = vmatprep.subr.mxu0 0.0
      %407 = vmatpush1.msra.mxu0 0.0
      %408 = vmatprep.subr.mxu0 0.0
      %409 = vmatpush1.msra.mxu0 0.0
      %410 = vmatprep.subr.mxu0 0.0
      %411 = vmatpush1.msra.mxu0 0.0
      %412 = vmatprep.mubr.f32.mxu0 0.0
      %413 = vmatmul.mubr.f32.gmra.mrb[0].mxu0 %v301
      %v414 = vpop.f32.mrb[0].mxu0
      %v415 = vadd.f32 0.0, %v414
      %v416 = vpop.f32.mrb[0].mxu0
      %417 = vmatprep.mubr.f32.mxu0 0.0
      %418 = vmatmul.mubr.f32.gmra.mrb[0].mxu0 %v304
      %v419 = vpop.f32.mrb[0].mxu0
      %v420 = vadd.f32 0.0, %v419
      %v421 = vpop.f32.mrb[0].mxu0
      %422 = vmatprep.mubr.f32.mxu0 0.0
      %423 = vmatmul.mubr.f32.gmra.mrb[0].mxu0 %v307
      %v424 = vpop.f32.mrb[0].mxu0
      %v425 = vadd.f32 0.0, %v424
      %v426 = vpop.f32.mrb[0].mxu0
      %427 = vmatprep.mubr.f32.mxu0 0.0
      %428 = vmatmul.mubr.f32.gmra.mrb[0].mxu0 %v310
      %v429 = vpop.f32.mrb[0].mxu0
      %v430 = vadd.f32 0.0, %v429
      %v431 = vpop.f32.mrb[0].mxu0
      %432 = vmatprep.mubr.f32.mxu0 0.0
      %433 = vmatmul.mubr.f32.gmra.mrb[0].mxu0 %v313
      %v434 = vpop.f32.mrb[0].mxu0
      %v435 = vadd.f32 0.0, %v434
      %v436 = vpop.f32.mrb[0].mxu0
      %437 = vmatprep.mubr.f32.mxu0 0.0
      %438 = vmatmul.mubr.f32.gmra.mrb[0].mxu0 %v316
      %v439 = vpop.f32.mrb[0].mxu0
      %v440 = vadd.f32 0.0, %v439
      %v441 = vpop.f32.mrb[0].mxu0
      %442 = vmatprep.mubr.f32.mxu0 0.0
      %443 = vmatmul.mubr.f32.gmra.mrb[0].mxu0 %v319
      %v444 = vpop.f32.mrb[0].mxu0
      %v445 = vadd.f32 0.0, %v444
      %v446 = vpop.f32.mrb[0].mxu0
      %447 = vmatprep.mubr.f32.mxu0 0.0
      %448 = vmatmul.mubr.f32.gmra.mrb[0].mxu0 %v322
      %v449 = vpop.f32.mrb[0].mxu0
      %v450 = vadd.f32 0.0, %v449
      %v451 = vpop.f32.mrb[0].mxu0
      %452 = vmatprep.mubr.f32.mxu0 0.0
      %453 = vmatmul.mubr.f32.gmra.mrb[0].mxu0 %v325
      %v454 = vpop.f32.mrb[0].mxu0
      %v455 = vadd.f32 0.0, %v454
      %v456 = vpop.f32.mrb[0].mxu0
      %457 = vmatprep.mubr.f32.mxu0 0.0
      %458 = vmatmul.mubr.f32.gmra.mrb[0].mxu0 %v328
      %v459 = vpop.f32.mrb[0].mxu0
      %v460 = vadd.f32 0.0, %v459
      %v461 = vpop.f32.mrb[0].mxu0
      %462 = vmatprep.mubr.f32.mxu0 0.0
      %463 = vmatmul.mubr.f32.gmra.mrb[0].mxu0 %v331
      %v464 = vpop.f32.mrb[0].mxu0
      %v465 = vadd.f32 0.0, %v464
      %v466 = vpop.f32.mrb[0].mxu0
      %467 = vmatprep.mubr.f32.mxu0 0.0
      %468 = vmatmul.mubr.f32.gmra.mrb[0].mxu0 %v334
      %v469 = vpop.f32.mrb[0].mxu0
      %v470 = vadd.f32 0.0, %v469
      %v471 = vpop.f32.mrb[0].mxu0
      %472 = vmatprep.mubr.f32.mxu0 0.0
      %473 = vmatmul.mubr.f32.gmra.mrb[0].mxu0 %v337
      %v474 = vpop.f32.mrb[0].mxu0
      %v475 = vadd.f32 0.0, %v474
      %v476 = vpop.f32.mrb[0].mxu0
      %477 = vmatprep.mubr.f32.mxu0 0.0
      %478 = vmatmul.mubr.f32.gmra.mrb[0].mxu0 %v340
      %v479 = vpop.f32.mrb[0].mxu0
      %v480 = vadd.f32 0.0, %v479
      %v481 = vpop.f32.mrb[0].mxu0
      %482 = vmatprep.mubr.f32.mxu0 0.0
      %483 = vmatmul.mubr.f32.gmra.mrb[0].mxu0 %v343
      %v484 = vpop.f32.mrb[0].mxu0
      %v485 = vadd.f32 0.0, %v484
      %v486 = vpop.f32.mrb[0].mxu0
      %487 = vmatprep.mubr.f32.mxu0 0.0
      %488 = vmatmul.mubr.f32.gmra.mrb[0].mxu0 %v346
      %v489 = vpop.f32.mrb[0].mxu0
      %v490 = vadd.f32 0.0, %v489
      %v491 = vpop.f32.mrb[0].mxu0
      %492 = vdwg.mxu0
      %v494 = vsel %vm299, %v264, 0
      %v497 = vsel %vm299, %v265, 0
      %v500 = vsel %vm299, %v266, 0
      %v503 = vsel %vm299, %v267, 0
      %v506 = vsel %vm299, %v268, 0
      %v509 = vsel %vm299, %v269, 0
      %v512 = vsel %vm299, %v270, 0
      %v515 = vsel %vm299, %v271, 0
      %v518 = vsel %vm299, %v272, 0
      %v521 = vsel %vm299, %v273, 0
      %v524 = vsel %vm299, %v274, 0
      %v527 = vsel %vm299, %v275, 0
      %v530 = vsel %vm299, %v276, 0
      %v533 = vsel %vm299, %v277, 0
      %v536 = vsel %vm299, %v278, 0
      %v539 = vsel %vm299, %v279, 0
      %541 = vmatprep.subr.mxu0 0.0
      %542 = vmatpush1.msra.mxu0 %v280
      %543 = vmatprep.subr.mxu0 0.0
      %544 = vmatpush1.msra.mxu0 0.0
      %545 = vmatprep.subr.mxu0 0.0
      %546 = vmatpush1.msra.mxu0 0.0
      %547 = vmatprep.subr.mxu0 0.0
      %548 = vmatpush1.msra.mxu0 0.0
      %549 = vmatprep.subr.mxu0 0.0
      %550 = vmatpush1.msra.mxu0 0.0
      %551 = vmatprep.subr.mxu0 0.0
      %552 = vmatpush1.msra.mxu0 0.0
      %553 = vmatprep.subr.mxu0 0.0
      %554 = vmatpush1.msra.mxu0 0.0
      %555 = vmatprep.subr.mxu0 0.0
      %556 = vmatpush1.msra.mxu0 0.0
      %557 = vmatprep.subr.mxu0 0.0
      %558 = vmatpush1.msra.mxu0 0.0
      %559 = vmatprep.subr.mxu0 0.0
      %560 = vmatpush1.msra.mxu0 0.0
      %561 = vmatprep.subr.mxu0 0.0
      %562 = vmatpush1.msra.mxu0 0.0
      %563 = vmatprep.subr.mxu0 0.0
      %564 = vmatpush1.msra.mxu0 0.0
      %565 = vmatprep.subr.mxu0 0.0
      %566 = vmatpush1.msra.mxu0 0.0
      %567 = vmatprep.subr.mxu0 0.0
      %568 = vmatpush1.msra.mxu0 0.0
      %569 = vmatprep.subr.mxu0 0.0
      %570 = vmatpush1.msra.mxu0 0.0
      %571 = vmatprep.subr.mxu0 0.0
      %572 = vmatpush1.msra.mxu0 0.0
      %573 = vmatprep.subr.mxu0 0.0
      %574 = vmatpush1.msra.mxu0 0.0
      %575 = vmatprep.subr.mxu0 0.0
      %576 = vmatpush1.msra.mxu0 0.0
      %577 = vmatprep.subr.mxu0 0.0
      %578 = vmatpush1.msra.mxu0 0.0
      %579 = vmatprep.subr.mxu0 0.0
      %580 = vmatpush1.msra.mxu0 0.0
      %581 = vmatprep.subr.mxu0 0.0
      %582 = vmatpush1.msra.mxu0 0.0
      %583 = vmatprep.subr.mxu0 0.0
      %584 = vmatpush1.msra.mxu0 0.0
      %585 = vmatprep.subr.mxu0 0.0
      %586 = vmatpush1.msra.mxu0 0.0
      %587 = vmatprep.subr.mxu0 0.0
      %588 = vmatpush1.msra.mxu0 0.0
      %589 = vmatprep.subr.mxu0 0.0
      %590 = vmatpush1.msra.mxu0 0.0
      %591 = vmatprep.subr.mxu0 0.0
      %592 = vmatpush1.msra.mxu0 0.0
      %593 = vmatprep.subr.mxu0 0.0
      %594 = vmatpush1.msra.mxu0 0.0
      %595 = vmatprep.subr.mxu0 0.0
      %596 = vmatpush1.msra.mxu0 0.0
      %597 = vmatprep.subr.mxu0 0.0
      %598 = vmatpush1.msra.mxu0 0.0
      %599 = vmatprep.subr.mxu0 0.0
      %600 = vmatpush1.msra.mxu0 0.0
      %601 = vmatprep.subr.mxu0 0.0
      %602 = vmatpush1.msra.mxu0 0.0
      %603 = vmatprep.subr.mxu0 0.0
      %604 = vmatpush1.msra.mxu0 0.0
      %605 = vmatprep.mubr.f32.mxu0 0.0
      %606 = vmatmul.mubr.f32.gmra.mrb[0].mxu0 %v494
      %v607 = vpop.f32.mrb[0].mxu0
      %v608 = vadd.f32 %v415, %v607
      %v609 = vpop.f32.mrb[0].mxu0
      %610 = vmatprep.mubr.f32.mxu0 0.0
      %611 = vmatmul.mubr.f32.gmra.mrb[0].mxu0 %v497
      %v612 = vpop.f32.mrb[0].mxu0
      %v613 = vadd.f32 %v420, %v612
      %v614 = vpop.f32.mrb[0].mxu0
      %615 = vmatprep.mubr.f32.mxu0 0.0
      %616 = vmatmul.mubr.f32.gmra.mrb[0].mxu0 %v500
      %v617 = vpop.f32.mrb[0].mxu0
      %v618 = vadd.f32 %v425, %v617
      %v619 = vpop.f32.mrb[0].mxu0
      %620 = vmatprep.mubr.f32.mxu0 0.0
      %621 = vmatmul.mubr.f32.gmra.mrb[0].mxu0 %v503
      %v622 = vpop.f32.mrb[0].mxu0
      %v623 = vadd.f32 %v430, %v622
      %v624 = vpop.f32.mrb[0].mxu0
      %625 = vmatprep.mubr.f32.mxu0 0.0
      %626 = vmatmul.mubr.f32.gmra.mrb[0].mxu0 %v506
      %v627 = vpop.f32.mrb[0].mxu0
      %v628 = vadd.f32 %v435, %v627
      %v629 = vpop.f32.mrb[0].mxu0
      %630 = vmatprep.mubr.f32.mxu0 0.0
      %631 = vmatmul.mubr.f32.gmra.mrb[0].mxu0 %v509
      %v632 = vpop.f32.mrb[0].mxu0
      %v633 = vadd.f32 %v440, %v632
      %v634 = vpop.f32.mrb[0].mxu0
      %635 = vmatprep.mubr.f32.mxu0 0.0
      %636 = vmatmul.mubr.f32.gmra.mrb[0].mxu0 %v512
      %v637 = vpop.f32.mrb[0].mxu0
      %v638 = vadd.f32 %v445, %v637
      %v639 = vpop.f32.mrb[0].mxu0
      %640 = vmatprep.mubr.f32.mxu0 0.0
      %641 = vmatmul.mubr.f32.gmra.mrb[0].mxu0 %v515
      %v642 = vpop.f32.mrb[0].mxu0
      %v643 = vadd.f32 %v450, %v642
      %v644 = vpop.f32.mrb[0].mxu0
      %645 = vmatprep.mubr.f32.mxu0 0.0
      %646 = vmatmul.mubr.f32.gmra.mrb[0].mxu0 %v518
      %v647 = vpop.f32.mrb[0].mxu0
      %v648 = vadd.f32 %v455, %v647
      %v649 = vpop.f32.mrb[0].mxu0
      %650 = vmatprep.mubr.f32.mxu0 0.0
      %651 = vmatmul.mubr.f32.gmra.mrb[0].mxu0 %v521
      %v652 = vpop.f32.mrb[0].mxu0
      %v653 = vadd.f32 %v460, %v652
      %v654 = vpop.f32.mrb[0].mxu0
      %655 = vmatprep.mubr.f32.mxu0 0.0
      %656 = vmatmul.mubr.f32.gmra.mrb[0].mxu0 %v524
      %v657 = vpop.f32.mrb[0].mxu0
      %v658 = vadd.f32 %v465, %v657
      %v659 = vpop.f32.mrb[0].mxu0
      %660 = vmatprep.mubr.f32.mxu0 0.0
      %661 = vmatmul.mubr.f32.gmra.mrb[0].mxu0 %v527
      %v662 = vpop.f32.mrb[0].mxu0
      %v663 = vadd.f32 %v470, %v662
      %v664 = vpop.f32.mrb[0].mxu0
      %665 = vmatprep.mubr.f32.mxu0 0.0
      %666 = vmatmul.mubr.f32.gmra.mrb[0].mxu0 %v530
      %v667 = vpop.f32.mrb[0].mxu0
      %v668 = vadd.f32 %v475, %v667
      %v669 = vpop.f32.mrb[0].mxu0
      %670 = vmatprep.mubr.f32.mxu0 0.0
      %671 = vmatmul.mubr.f32.gmra.mrb[0].mxu0 %v533
      %v672 = vpop.f32.mrb[0].mxu0
      %v673 = vadd.f32 %v480, %v672
      %v674 = vpop.f32.mrb[0].mxu0
      %675 = vmatprep.mubr.f32.mxu0 0.0
      %676 = vmatmul.mubr.f32.gmra.mrb[0].mxu0 %v536
      %v677 = vpop.f32.mrb[0].mxu0
      %v678 = vadd.f32 %v485, %v677
      %v679 = vpop.f32.mrb[0].mxu0
      %680 = vmatprep.mubr.f32.mxu0 0.0
      %681 = vmatmul.mubr.f32.gmra.mrb[0].mxu0 %v539
      %v682 = vpop.f32.mrb[0].mxu0
      %v683 = vadd.f32 %v490, %v682
      %v684 = vpop.f32.mrb[0].mxu0
      %685 = vdwg.mxu0
      %v686 = vld [vmem:[%s252 + $0x2] sm:$0xff]
      %v687 = vld [vmem:[%s252 + $0xa] sm:$0xff]
      %v688 = vld [vmem:[%s252 + $0x1a] sm:$0xff]
      %v689 = vld [vmem:[%s252 + $0x22] sm:$0xff]
      %v690 = vld [vmem:[%s252 + $0x32] sm:$0xff]
      %v691 = vld [vmem:[%s252 + $0x3a] sm:$0xff]
      %v692 = vld [vmem:[%s252 + $0x4a] sm:$0xff]
      %v693 = vld [vmem:[%s252 + $0x52] sm:$0xff]
      %v694 = vld [vmem:[%s252 + $0x62] sm:$0xff]
      %v695 = vld [vmem:[%s252 + $0x6a] sm:$0xff]
      %v696 = vld [vmem:[%s252 + $0x7a] sm:$0xff]
      %v697 = vld [vmem:[%s252 + $0x82] sm:$0xff]
      %v698 = vld [vmem:[%s252 + $0x92] sm:$0xff]
      %v699 = vld [vmem:[%s252 + $0x9a] sm:$0xff]
      %v700 = vld [vmem:[%s252 + $0xaa] sm:$0xff]
      %v701 = vld [vmem:[%s252 + $0xb2] sm:$0xff]
      %s702 = scalar_lea.vmem %s1, 16
      %v703 = vld [vmem:[%s702] sm:$0xff]
      %v705 = vsel %vm299, %v686, 0
      %v708 = vsel %vm299, %v687, 0
      %v711 = vsel %vm299, %v688, 0
      %v714 = vsel %vm299, %v689, 0
      %v717 = vsel %vm299, %v690, 0
      %v720 = vsel %vm299, %v691, 0
      %v723 = vsel %vm299, %v692, 0
      %v726 = vsel %vm299, %v693, 0
      %v729 = vsel %vm299, %v694, 0
      %v732 = vsel %vm299, %v695, 0
      %v735 = vsel %vm299, %v696, 0
      %v738 = vsel %vm299, %v697, 0
      %v741 = vsel %vm299, %v698, 0
      %v744 = vsel %vm299, %v699, 0
      %v747 = vsel %vm299, %v700, 0
      %v750 = vsel %vm299, %v701, 0
      %752 = vmatprep.subr.mxu0 0.0
      %753 = vmatpush1.msra.mxu0 %v703
      %754 = vmatprep.subr.mxu0 0.0
      %755 = vmatpush1.msra.mxu0 0.0
      %756 = vmatprep.subr.mxu0 0.0
      %757 = vmatpush1.msra.mxu0 0.0
      %758 = vmatprep.subr.mxu0 0.0
      %759 = vmatpush1.msra.mxu0 0.0
      %760 = vmatprep.subr.mxu0 0.0
      %761 = vmatpush1.msra.mxu0 0.0
      %762 = vmatprep.subr.mxu0 0.0
      %763 = vmatpush1.msra.mxu0 0.0
      %764 = vmatprep.subr.mxu0 0.0
      %765 = vmatpush1.msra.mxu0 0.0
      %766 = vmatprep.subr.mxu0 0.0
      %767 = vmatpush1.msra.mxu0 0.0
      %768 = vmatprep.subr.mxu0 0.0
      %769 = vmatpush1.msra.mxu0 0.0
      %770 = vmatprep.subr.mxu0 0.0
      %771 = vmatpush1.msra.mxu0 0.0
      %772 = vmatprep.subr.mxu0 0.0
      %773 = vmatpush1.msra.mxu0 0.0
      %774 = vmatprep.subr.mxu0 0.0
      %775 = vmatpush1.msra.mxu0 0.0
      %776 = vmatprep.subr.mxu0 0.0
      %777 = vmatpush1.msra.mxu0 0.0
      %778 = vmatprep.subr.mxu0 0.0
      %779 = vmatpush1.msra.mxu0 0.0
      %780 = vmatprep.subr.mxu0 0.0
      %781 = vmatpush1.msra.mxu0 0.0
      %782 = vmatprep.subr.mxu0 0.0
      %783 = vmatpush1.msra.mxu0 0.0
      %784 = vmatprep.subr.mxu0 0.0
      %785 = vmatpush1.msra.mxu0 0.0
      %786 = vmatprep.subr.mxu0 0.0
      %787 = vmatpush1.msra.mxu0 0.0
      %788 = vmatprep.subr.mxu0 0.0
      %789 = vmatpush1.msra.mxu0 0.0
      %790 = vmatprep.subr.mxu0 0.0
      %791 = vmatpush1.msra.mxu0 0.0
      %792 = vmatprep.subr.mxu0 0.0
      %793 = vmatpush1.msra.mxu0 0.0
      %794 = vmatprep.subr.mxu0 0.0
      %795 = vmatpush1.msra.mxu0 0.0
      %796 = vmatprep.subr.mxu0 0.0
      %797 = vmatpush1.msra.mxu0 0.0
      %798 = vmatprep.subr.mxu0 0.0
      %799 = vmatpush1.msra.mxu0 0.0
      %800 = vmatprep.subr.mxu0 0.0
      %801 = vmatpush1.msra.mxu0 0.0
      %802 = vmatprep.subr.mxu0 0.0
      %803 = vmatpush1.msra.mxu0 0.0
      %804 = vmatprep.subr.mxu0 0.0
      %805 = vmatpush1.msra.mxu0 0.0
      %806 = vmatprep.subr.mxu0 0.0
      %807 = vmatpush1.msra.mxu0 0.0
      %808 = vmatprep.subr.mxu0 0.0
      %809 = vmatpush1.msra.mxu0 0.0
      %810 = vmatprep.subr.mxu0 0.0
      %811 = vmatpush1.msra.mxu0 0.0
      %812 = vmatprep.subr.mxu0 0.0
      %813 = vmatpush1.msra.mxu0 0.0
      %814 = vmatprep.subr.mxu0 0.0
      %815 = vmatpush1.msra.mxu0 0.0
      %816 = vmatprep.mubr.f32.mxu0 0.0
      %817 = vmatmul.mubr.f32.gmra.mrb[0].mxu0 %v705
      %v818 = vpop.f32.mrb[0].mxu0
      %v819 = vadd.f32 0.0, %v818
      %v820 = vpop.f32.mrb[0].mxu0
      %821 = vmatprep.mubr.f32.mxu0 0.0
      %822 = vmatmul.mubr.f32.gmra.mrb[0].mxu0 %v708
      %v823 = vpop.f32.mrb[0].mxu0
      %v824 = vadd.f32 0.0, %v823
      %v825 = vpop.f32.mrb[0].mxu0
      %826 = vmatprep.mubr.f32.mxu0 0.0
      %827 = vmatmul.mubr.f32.gmra.mrb[0].mxu0 %v711
      %v828 = vpop.f32.mrb[0].mxu0
      %v829 = vadd.f32 0.0, %v828
      %v830 = vpop.f32.mrb[0].mxu0
      %831 = vmatprep.mubr.f32.mxu0 0.0
      %832 = vmatmul.mubr.f32.gmra.mrb[0].mxu0 %v714
      %v833 = vpop.f32.mrb[0].mxu0
      %v834 = vadd.f32 0.0, %v833
      %v835 = vpop.f32.mrb[0].mxu0
      %836 = vmatprep.mubr.f32.mxu0 0.0
      %837 = vmatmul.mubr.f32.gmra.mrb[0].mxu0 %v717
      %v838 = vpop.f32.mrb[0].mxu0
      %v839 = vadd.f32 0.0, %v838
      %v840 = vpop.f32.mrb[0].mxu0
      %841 = vmatprep.mubr.f32.mxu0 0.0
      %842 = vmatmul.mubr.f32.gmra.mrb[0].mxu0 %v720
      %v843 = vpop.f32.mrb[0].mxu0
      %v844 = vadd.f32 0.0, %v843
      %v845 = vpop.f32.mrb[0].mxu0
      %846 = vmatprep.mubr.f32.mxu0 0.0
      %847 = vmatmul.mubr.f32.gmra.mrb[0].mxu0 %v723
      %v848 = vpop.f32.mrb[0].mxu0
      %v849 = vadd.f32 0.0, %v848
      %v850 = vpop.f32.mrb[0].mxu0
      %851 = vmatprep.mubr.f32.mxu0 0.0
      %852 = vmatmul.mubr.f32.gmra.mrb[0].mxu0 %v726
      %v853 = vpop.f32.mrb[0].mxu0
      %v854 = vadd.f32 0.0, %v853
      %v855 = vpop.f32.mrb[0].mxu0
      %856 = vmatprep.mubr.f32.mxu0 0.0
      %857 = vmatmul.mubr.f32.gmra.mrb[0].mxu0 %v729
      %v858 = vpop.f32.mrb[0].mxu0
      %v859 = vadd.f32 0.0, %v858
      %v860 = vpop.f32.mrb[0].mxu0
      %861 = vmatprep.mubr.f32.mxu0 0.0
      %862 = vmatmul.mubr.f32.gmra.mrb[0].mxu0 %v732
      %v863 = vpop.f32.mrb[0].mxu0
      %v864 = vadd.f32 0.0, %v863
      %v865 = vpop.f32.mrb[0].mxu0
      %866 = vmatprep.mubr.f32.mxu0 0.0
      %867 = vmatmul.mubr.f32.gmra.mrb[0].mxu0 %v735
      %v868 = vpop.f32.mrb[0].mxu0
      %v869 = vadd.f32 0.0, %v868
      %v870 = vpop.f32.mrb[0].mxu0
      %871 = vmatprep.mubr.f32.mxu0 0.0
      %872 = vmatmul.mubr.f32.gmra.mrb[0].mxu0 %v738
      %v873 = vpop.f32.mrb[0].mxu0
      %v874 = vadd.f32 0.0, %v873
      %v875 = vpop.f32.mrb[0].mxu0
      %876 = vmatprep.mubr.f32.mxu0 0.0
      %877 = vmatmul.mubr.f32.gmra.mrb[0].mxu0 %v741
      %v878 = vpop.f32.mrb[0].mxu0
      %v879 = vadd.f32 0.0, %v878
      %v880 = vpop.f32.mrb[0].mxu0
      %881 = vmatprep.mubr.f32.mxu0 0.0
      %882 = vmatmul.mubr.f32.gmra.mrb[0].mxu0 %v744
      %v883 = vpop.f32.mrb[0].mxu0
      %v884 = vadd.f32 0.0, %v883
      %v885 = vpop.f32.mrb[0].mxu0
      %886 = vmatprep.mubr.f32.mxu0 0.0
      %887 = vmatmul.mubr.f32.gmra.mrb[0].mxu0 %v747
      %v888 = vpop.f32.mrb[0].mxu0
      %v889 = vadd.f32 0.0, %v888
      %v890 = vpop.f32.mrb[0].mxu0
      %891 = vmatprep.mubr.f32.mxu0 0.0
      %892 = vmatmul.mubr.f32.gmra.mrb[0].mxu0 %v750
      %v893 = vpop.f32.mrb[0].mxu0
      %v894 = vadd.f32 0.0, %v893
      %v895 = vpop.f32.mrb[0].mxu0
      %896 = vdwg.mxu0
      %v897 = vadd.f32 %v608, %v819
      %v898 = vadd.f32 %v613, %v824
      %v899 = vadd.f32 %v618, %v829
      %v900 = vadd.f32 %v623, %v834
      %v901 = vadd.f32 %v628, %v839
      %v902 = vadd.f32 %v633, %v844
      %v903 = vadd.f32 %v638, %v849
      %v904 = vadd.f32 %v643, %v854
      %v905 = vadd.f32 %v648, %v859
      %v906 = vadd.f32 %v653, %v864
      %v907 = vadd.f32 %v658, %v869
      %v908 = vadd.f32 %v663, %v874
      %v909 = vadd.f32 %v668, %v879
      %v910 = vadd.f32 %v673, %v884
      %v911 = vadd.f32 %v678, %v889
      %v912 = vadd.f32 %v683, %v894
      %s913 = scalar_lea.vmem %s252, 24
      %v914 = vld [vmem:[%s913] sm:$0xff]
      %v915 = vld [vmem:[%s913 + $0x8] sm:$0xff]
      %v916 = vld [vmem:[%s913 + $0x18] sm:$0xff]
      %v917 = vld [vmem:[%s913 + $0x20] sm:$0xff]
      %v918 = vld [vmem:[%s913 + $0x30] sm:$0xff]
      %v919 = vld [vmem:[%s913 + $0x38] sm:$0xff]
      %v920 = vld [vmem:[%s913 + $0x48] sm:$0xff]
      %v921 = vld [vmem:[%s913 + $0x50] sm:$0xff]
      %v922 = vld [vmem:[%s913 + $0x60] sm:$0xff]
      %v923 = vld [vmem:[%s913 + $0x68] sm:$0xff]
      %v924 = vld [vmem:[%s913 + $0x78] sm:$0xff]
      %v925 = vld [vmem:[%s913 + $0x80] sm:$0xff]
      %v926 = vld [vmem:[%s913 + $0x90] sm:$0xff]
      %v927 = vld [vmem:[%s913 + $0x98] sm:$0xff]
      %v928 = vld [vmem:[%s913 + $0xa8] sm:$0xff]
      %v929 = vld [vmem:[%s913 + $0xb0] sm:$0xff]
      %s930 = scalar_lea.vmem %s1, 24
      %v931 = vld [vmem:[%s930] sm:$0xff]
      %v933 = vsel %vm299, %v914, 0
      %v936 = vsel %vm299, %v915, 0
      %v939 = vsel %vm299, %v916, 0
      %v942 = vsel %vm299, %v917, 0
      %v945 = vsel %vm299, %v918, 0
      %v948 = vsel %vm299, %v919, 0
      %v951 = vsel %vm299, %v920, 0
      %v954 = vsel %vm299, %v921, 0
      %v957 = vsel %vm299, %v922, 0
      %v960 = vsel %vm299, %v923, 0
      %v963 = vsel %vm299, %v924, 0
      %v966 = vsel %vm299, %v925, 0
      %v969 = vsel %vm299, %v926, 0
      %v972 = vsel %vm299, %v927, 0
      %v975 = vsel %vm299, %v928, 0
      %v978 = vsel %vm299, %v929, 0
      %980 = vmatprep.subr.mxu0 0.0
      %981 = vmatpush1.msra.mxu0 %v931
      %982 = vmatprep.subr.mxu0 0.0
      %983 = vmatpush1.msra.mxu0 0.0
      %984 = vmatprep.subr.mxu0 0.0
      %985 = vmatpush1.msra.mxu0 0.0
      %986 = vmatprep.subr.mxu0 0.0
      %987 = vmatpush1.msra.mxu0 0.0
      %988 = vmatprep.subr.mxu0 0.0
      %989 = vmatpush1.msra.mxu0 0.0
      %990 = vmatprep.subr.mxu0 0.0
      %991 = vmatpush1.msra.mxu0 0.0
      %992 = vmatprep.subr.mxu0 0.0
      %993 = vmatpush1.msra.mxu0 0.0
      %994 = vmatprep.subr.mxu0 0.0
      %995 = vmatpush1.msra.mxu0 0.0
      %996 = vmatprep.subr.mxu0 0.0
      %997 = vmatpush1.msra.mxu0 0.0
      %998 = vmatprep.subr.mxu0 0.0
      %999 = vmatpush1.msra.mxu0 0.0
      %1000 = vmatprep.subr.mxu0 0.0
      %1001 = vmatpush1.msra.mxu0 0.0
      %1002 = vmatprep.subr.mxu0 0.0
      %1003 = vmatpush1.msra.mxu0 0.0
      %1004 = vmatprep.subr.mxu0 0.0
      %1005 = vmatpush1.msra.mxu0 0.0
      %1006 = vmatprep.subr.mxu0 0.0
      %1007 = vmatpush1.msra.mxu0 0.0
      %1008 = vmatprep.subr.mxu0 0.0
      %1009 = vmatpush1.msra.mxu0 0.0
      %1010 = vmatprep.subr.mxu0 0.0
      %1011 = vmatpush1.msra.mxu0 0.0
      %1012 = vmatprep.subr.mxu0 0.0
      %1013 = vmatpush1.msra.mxu0 0.0
      %1014 = vmatprep.subr.mxu0 0.0
      %1015 = vmatpush1.msra.mxu0 0.0
      %1016 = vmatprep.subr.mxu0 0.0
      %1017 = vmatpush1.msra.mxu0 0.0
      %1018 = vmatprep.subr.mxu0 0.0
      %1019 = vmatpush1.msra.mxu0 0.0
      %1020 = vmatprep.subr.mxu0 0.0
      %1021 = vmatpush1.msra.mxu0 0.0
      %1022 = vmatprep.subr.mxu0 0.0
      %1023 = vmatpush1.msra.mxu0 0.0
      %1024 = vmatprep.subr.mxu0 0.0
      %1025 = vmatpush1.msra.mxu0 0.0
      %1026 = vmatprep.subr.mxu0 0.0
      %1027 = vmatpush1.msra.mxu0 0.0
      %1028 = vmatprep.subr.mxu0 0.0
      %1029 = vmatpush1.msra.mxu0 0.0
      %1030 = vmatprep.subr.mxu0 0.0
      %1031 = vmatpush1.msra.mxu0 0.0
      %1032 = vmatprep.subr.mxu0 0.0
      %1033 = vmatpush1.msra.mxu0 0.0
      %1034 = vmatprep.subr.mxu0 0.0
      %1035 = vmatpush1.msra.mxu0 0.0
      %1036 = vmatprep.subr.mxu0 0.0
      %1037 = vmatpush1.msra.mxu0 0.0
      %1038 = vmatprep.subr.mxu0 0.0
      %1039 = vmatpush1.msra.mxu0 0.0
      %1040 = vmatprep.subr.mxu0 0.0
      %1041 = vmatpush1.msra.mxu0 0.0
      %1042 = vmatprep.subr.mxu0 0.0
      %1043 = vmatpush1.msra.mxu0 0.0
      %1044 = vmatprep.mubr.f32.mxu0 0.0
      %1045 = vmatmul.mubr.f32.gmra.mrb[0].mxu0 %v933
      %v1046 = vpop.f32.mrb[0].mxu0
      %v1047 = vadd.f32 0.0, %v1046
      %v1048 = vpop.f32.mrb[0].mxu0
      %1049 = vmatprep.mubr.f32.mxu0 0.0
      %1050 = vmatmul.mubr.f32.gmra.mrb[0].mxu0 %v936
      %v1051 = vpop.f32.mrb[0].mxu0
      %v1052 = vadd.f32 0.0, %v1051
      %v1053 = vpop.f32.mrb[0].mxu0
      %1054 = vmatprep.mubr.f32.mxu0 0.0
      %1055 = vmatmul.mubr.f32.gmra.mrb[0].mxu0 %v939
      %v1056 = vpop.f32.mrb[0].mxu0
      %v1057 = vadd.f32 0.0, %v1056
      %v1058 = vpop.f32.mrb[0].mxu0
      %1059 = vmatprep.mubr.f32.mxu0 0.0
      %1060 = vmatmul.mubr.f32.gmra.mrb[0].mxu0 %v942
      %v1061 = vpop.f32.mrb[0].mxu0
      %v1062 = vadd.f32 0.0, %v1061
      %v1063 = vpop.f32.mrb[0].mxu0
      %1064 = vmatprep.mubr.f32.mxu0 0.0
      %1065 = vmatmul.mubr.f32.gmra.mrb[0].mxu0 %v945
      %v1066 = vpop.f32.mrb[0].mxu0
      %v1067 = vadd.f32 0.0, %v1066
      %v1068 = vpop.f32.mrb[0].mxu0
      %1069 = vmatprep.mubr.f32.mxu0 0.0
      %1070 = vmatmul.mubr.f32.gmra.mrb[0].mxu0 %v948
      %v1071 = vpop.f32.mrb[0].mxu0
      %v1072 = vadd.f32 0.0, %v1071
      %v1073 = vpop.f32.mrb[0].mxu0
      %1074 = vmatprep.mubr.f32.mxu0 0.0
      %1075 = vmatmul.mubr.f32.gmra.mrb[0].mxu0 %v951
      %v1076 = vpop.f32.mrb[0].mxu0
      %v1077 = vadd.f32 0.0, %v1076
      %v1078 = vpop.f32.mrb[0].mxu0
      %1079 = vmatprep.mubr.f32.mxu0 0.0
      %1080 = vmatmul.mubr.f32.gmra.mrb[0].mxu0 %v954
      %v1081 = vpop.f32.mrb[0].mxu0
      %v1082 = vadd.f32 0.0, %v1081
      %v1083 = vpop.f32.mrb[0].mxu0
      %1084 = vmatprep.mubr.f32.mxu0 0.0
      %1085 = vmatmul.mubr.f32.gmra.mrb[0].mxu0 %v957
      %v1086 = vpop.f32.mrb[0].mxu0
      %v1087 = vadd.f32 0.0, %v1086
      %v1088 = vpop.f32.mrb[0].mxu0
      %1089 = vmatprep.mubr.f32.mxu0 0.0
      %1090 = vmatmul.mubr.f32.gmra.mrb[0].mxu0 %v960
      %v1091 = vpop.f32.mrb[0].mxu0
      %v1092 = vadd.f32 0.0, %v1091
      %v1093 = vpop.f32.mrb[0].mxu0
      %1094 = vmatprep.mubr.f32.mxu0 0.0
      %1095 = vmatmul.mubr.f32.gmra.mrb[0].mxu0 %v963
      %v1096 = vpop.f32.mrb[0].mxu0
      %v1097 = vadd.f32 0.0, %v1096
      %v1098 = vpop.f32.mrb[0].mxu0
      %1099 = vmatprep.mubr.f32.mxu0 0.0
      %1100 = vmatmul.mubr.f32.gmra.mrb[0].mxu0 %v966
      %v1101 = vpop.f32.mrb[0].mxu0
      %v1102 = vadd.f32 0.0, %v1101
      %v1103 = vpop.f32.mrb[0].mxu0
      %1104 = vmatprep.mubr.f32.mxu0 0.0
      %1105 = vmatmul.mubr.f32.gmra.mrb[0].mxu0 %v969
      %v1106 = vpop.f32.mrb[0].mxu0
      %v1107 = vadd.f32 0.0, %v1106
      %v1108 = vpop.f32.mrb[0].mxu0
      %1109 = vmatprep.mubr.f32.mxu0 0.0
      %1110 = vmatmul.mubr.f32.gmra.mrb[0].mxu0 %v972
      %v1111 = vpop.f32.mrb[0].mxu0
      %v1112 = vadd.f32 0.0, %v1111
      %v1113 = vpop.f32.mrb[0].mxu0
      %1114 = vmatprep.mubr.f32.mxu0 0.0
      %1115 = vmatmul.mubr.f32.gmra.mrb[0].mxu0 %v975
      %v1116 = vpop.f32.mrb[0].mxu0
      %v1117 = vadd.f32 0.0, %v1116
      %v1118 = vpop.f32.mrb[0].mxu0
      %1119 = vmatprep.mubr.f32.mxu0 0.0
      %1120 = vmatmul.mubr.f32.gmra.mrb[0].mxu0 %v978
      %v1121 = vpop.f32.mrb[0].mxu0
      %v1122 = vadd.f32 0.0, %v1121
      %v1123 = vpop.f32.mrb[0].mxu0
      %1124 = vdwg.mxu0
      %v1125 = vadd.f32 %v897, %v1047
      %v1126 = vadd.f32 %v898, %v1052
      %v1127 = vadd.f32 %v899, %v1057
      %v1128 = vadd.f32 %v900, %v1062
      %v1129 = vadd.f32 %v901, %v1067
      %v1130 = vadd.f32 %v902, %v1072
      %v1131 = vadd.f32 %v903, %v1077
      %v1132 = vadd.f32 %v904, %v1082
      %v1133 = vadd.f32 %v905, %v1087
      %v1134 = vadd.f32 %v906, %v1092
      %v1135 = vadd.f32 %v907, %v1097
      %v1136 = vadd.f32 %v908, %v1102
      %v1137 = vadd.f32 %v909, %v1107
      %v1138 = vadd.f32 %v910, %v1112
      %v1139 = vadd.f32 %v911, %v1117
      %v1140 = vadd.f32 %v912, %v1122
      %v1141 = vld [vmem:[%s913 + $0x1] sm:$0xff]
      %v1142 = vld [vmem:[%s913 + $0x9] sm:$0xff]
      %v1143 = vld [vmem:[%s913 + $0x19] sm:$0xff]
      %v1144 = vld [vmem:[%s913 + $0x21] sm:$0xff]
      %v1145 = vld [vmem:[%s913 + $0x31] sm:$0xff]
      %v1146 = vld [vmem:[%s913 + $0x39] sm:$0xff]
      %v1147 = vld [vmem:[%s913 + $0x49] sm:$0xff]
      %v1148 = vld [vmem:[%s913 + $0x51] sm:$0xff]
      %v1149 = vld [vmem:[%s913 + $0x61] sm:$0xff]
      %v1150 = vld [vmem:[%s913 + $0x69] sm:$0xff]
      %v1151 = vld [vmem:[%s913 + $0x79] sm:$0xff]
      %v1152 = vld [vmem:[%s913 + $0x81] sm:$0xff]
      %v1153 = vld [vmem:[%s913 + $0x91] sm:$0xff]
      %v1154 = vld [vmem:[%s913 + $0x99] sm:$0xff]
      %v1155 = vld [vmem:[%s913 + $0xa9] sm:$0xff]
      %v1156 = vld [vmem:[%s913 + $0xb1] sm:$0xff]
      %s1157 = scalar_lea.vmem %s1, 32
      %v1158 = vld [vmem:[%s1157] sm:$0xff]
      %v1160 = vsel %vm299, %v1141, 0
      %v1163 = vsel %vm299, %v1142, 0
      %v1166 = vsel %vm299, %v1143, 0
      %v1169 = vsel %vm299, %v1144, 0
      %v1172 = vsel %vm299, %v1145, 0
      %v1175 = vsel %vm299, %v1146, 0
      %v1178 = vsel %vm299, %v1147, 0
      %v1181 = vsel %vm299, %v1148, 0
      %v1184 = vsel %vm299, %v1149, 0
      %v1187 = vsel %vm299, %v1150, 0
      %v1190 = vsel %vm299, %v1151, 0
      %v1193 = vsel %vm299, %v1152, 0
      %v1196 = vsel %vm299, %v1153, 0
      %v1199 = vsel %vm299, %v1154, 0
      %v1202 = vsel %vm299, %v1155, 0
      %v1205 = vsel %vm299, %v1156, 0
      %1207 = vmatprep.subr.mxu0 0.0
      %1208 = vmatpush1.msra.mxu0 %v1158
      %1209 = vmatprep.subr.mxu0 0.0
      %1210 = vmatpush1.msra.mxu0 0.0
      %1211 = vmatprep.subr.mxu0 0.0
      %1212 = vmatpush1.msra.mxu0 0.0
      %1213 = vmatprep.subr.mxu0 0.0
      %1214 = vmatpush1.msra.mxu0 0.0
      %1215 = vmatprep.subr.mxu0 0.0
      %1216 = vmatpush1.msra.mxu0 0.0
      %1217 = vmatprep.subr.mxu0 0.0
      %1218 = vmatpush1.msra.mxu0 0.0
      %1219 = vmatprep.subr.mxu0 0.0
      %1220 = vmatpush1.msra.mxu0 0.0
      %1221 = vmatprep.subr.mxu0 0.0
      %1222 = vmatpush1.msra.mxu0 0.0
      %1223 = vmatprep.subr.mxu0 0.0
      %1224 = vmatpush1.msra.mxu0 0.0
      %1225 = vmatprep.subr.mxu0 0.0
      %1226 = vmatpush1.msra.mxu0 0.0
      %1227 = vmatprep.subr.mxu0 0.0
      %1228 = vmatpush1.msra.mxu0 0.0
      %1229 = vmatprep.subr.mxu0 0.0
      %1230 = vmatpush1.msra.mxu0 0.0
      %1231 = vmatprep.subr.mxu0 0.0
      %1232 = vmatpush1.msra.mxu0 0.0
      %1233 = vmatprep.subr.mxu0 0.0
      %1234 = vmatpush1.msra.mxu0 0.0
      %1235 = vmatprep.subr.mxu0 0.0
      %1236 = vmatpush1.msra.mxu0 0.0
      %1237 = vmatprep.subr.mxu0 0.0
      %1238 = vmatpush1.msra.mxu0 0.0
      %1239 = vmatprep.subr.mxu0 0.0
      %1240 = vmatpush1.msra.mxu0 0.0
      %1241 = vmatprep.subr.mxu0 0.0
      %1242 = vmatpush1.msra.mxu0 0.0
      %1243 = vmatprep.subr.mxu0 0.0
      %1244 = vmatpush1.msra.mxu0 0.0
      %1245 = vmatprep.subr.mxu0 0.0
      %1246 = vmatpush1.msra.mxu0 0.0
      %1247 = vmatprep.subr.mxu0 0.0
      %1248 = vmatpush1.msra.mxu0 0.0
      %1249 = vmatprep.subr.mxu0 0.0
      %1250 = vmatpush1.msra.mxu0 0.0
      %1251 = vmatprep.subr.mxu0 0.0
      %1252 = vmatpush1.msra.mxu0 0.0
      %1253 = vmatprep.subr.mxu0 0.0
      %1254 = vmatpush1.msra.mxu0 0.0
      %1255 = vmatprep.subr.mxu0 0.0
      %1256 = vmatpush1.msra.mxu0 0.0
      %1257 = vmatprep.subr.mxu0 0.0
      %1258 = vmatpush1.msra.mxu0 0.0
      %1259 = vmatprep.subr.mxu0 0.0
      %1260 = vmatpush1.msra.mxu0 0.0
      %1261 = vmatprep.subr.mxu0 0.0
      %1262 = vmatpush1.msra.mxu0 0.0
      %1263 = vmatprep.subr.mxu0 0.0
      %1264 = vmatpush1.msra.mxu0 0.0
      %1265 = vmatprep.subr.mxu0 0.0
      %1266 = vmatpush1.msra.mxu0 0.0
      %1267 = vmatprep.subr.mxu0 0.0
      %1268 = vmatpush1.msra.mxu0 0.0
      %1269 = vmatprep.subr.mxu0 0.0
      %1270 = vmatpush1.msra.mxu0 0.0
      %1271 = vmatprep.mubr.f32.mxu0 0.0
      %1272 = vmatmul.mubr.f32.gmra.mrb[0].mxu0 %v1160
      %v1273 = vpop.f32.mrb[0].mxu0
      %v1274 = vadd.f32 0.0, %v1273
      %v1275 = vpop.f32.mrb[0].mxu0
      %1276 = vmatprep.mubr.f32.mxu0 0.0
      %1277 = vmatmul.mubr.f32.gmra.mrb[0].mxu0 %v1163
      %v1278 = vpop.f32.mrb[0].mxu0
      %v1279 = vadd.f32 0.0, %v1278
      %v1280 = vpop.f32.mrb[0].mxu0
      %1281 = vmatprep.mubr.f32.mxu0 0.0
      %1282 = vmatmul.mubr.f32.gmra.mrb[0].mxu0 %v1166
      %v1283 = vpop.f32.mrb[0].mxu0
      %v1284 = vadd.f32 0.0, %v1283
      %v1285 = vpop.f32.mrb[0].mxu0
      %1286 = vmatprep.mubr.f32.mxu0 0.0
      %1287 = vmatmul.mubr.f32.gmra.mrb[0].mxu0 %v1169
      %v1288 = vpop.f32.mrb[0].mxu0
      %v1289 = vadd.f32 0.0, %v1288
      %v1290 = vpop.f32.mrb[0].mxu0
      %1291 = vmatprep.mubr.f32.mxu0 0.0
      %1292 = vmatmul.mubr.f32.gmra.mrb[0].mxu0 %v1172
      %v1293 = vpop.f32.mrb[0].mxu0
      %v1294 = vadd.f32 0.0, %v1293
      %v1295 = vpop.f32.mrb[0].mxu0
      %1296 = vmatprep.mubr.f32.mxu0 0.0
      %1297 = vmatmul.mubr.f32.gmra.mrb[0].mxu0 %v1175
      %v1298 = vpop.f32.mrb[0].mxu0
      %v1299 = vadd.f32 0.0, %v1298
      %v1300 = vpop.f32.mrb[0].mxu0
      %1301 = vmatprep.mubr.f32.mxu0 0.0
      %1302 = vmatmul.mubr.f32.gmra.mrb[0].mxu0 %v1178
      %v1303 = vpop.f32.mrb[0].mxu0
      %v1304 = vadd.f32 0.0, %v1303
      %v1305 = vpop.f32.mrb[0].mxu0
      %1306 = vmatprep.mubr.f32.mxu0 0.0
      %1307 = vmatmul.mubr.f32.gmra.mrb[0].mxu0 %v1181
      %v1308 = vpop.f32.mrb[0].mxu0
      %v1309 = vadd.f32 0.0, %v1308
      %v1310 = vpop.f32.mrb[0].mxu0
      %1311 = vmatprep.mubr.f32.mxu0 0.0
      %1312 = vmatmul.mubr.f32.gmra.mrb[0].mxu0 %v1184
      %v1313 = vpop.f32.mrb[0].mxu0
      %v1314 = vadd.f32 0.0, %v1313
      %v1315 = vpop.f32.mrb[0].mxu0
      %1316 = vmatprep.mubr.f32.mxu0 0.0
      %1317 = vmatmul.mubr.f32.gmra.mrb[0].mxu0 %v1187
      %v1318 = vpop.f32.mrb[0].mxu0
      %v1319 = vadd.f32 0.0, %v1318
      %v1320 = vpop.f32.mrb[0].mxu0
      %1321 = vmatprep.mubr.f32.mxu0 0.0
      %1322 = vmatmul.mubr.f32.gmra.mrb[0].mxu0 %v1190
      %v1323 = vpop.f32.mrb[0].mxu0
      %v1324 = vadd.f32 0.0, %v1323
      %v1325 = vpop.f32.mrb[0].mxu0
      %1326 = vmatprep.mubr.f32.mxu0 0.0
      %1327 = vmatmul.mubr.f32.gmra.mrb[0].mxu0 %v1193
      %v1328 = vpop.f32.mrb[0].mxu0
      %v1329 = vadd.f32 0.0, %v1328
      %v1330 = vpop.f32.mrb[0].mxu0
      %1331 = vmatprep.mubr.f32.mxu0 0.0
      %1332 = vmatmul.mubr.f32.gmra.mrb[0].mxu0 %v1196
      %v1333 = vpop.f32.mrb[0].mxu0
      %v1334 = vadd.f32 0.0, %v1333
      %v1335 = vpop.f32.mrb[0].mxu0
      %1336 = vmatprep.mubr.f32.mxu0 0.0
      %1337 = vmatmul.mubr.f32.gmra.mrb[0].mxu0 %v1199
      %v1338 = vpop.f32.mrb[0].mxu0
      %v1339 = vadd.f32 0.0, %v1338
      %v1340 = vpop.f32.mrb[0].mxu0
      %1341 = vmatprep.mubr.f32.mxu0 0.0
      %1342 = vmatmul.mubr.f32.gmra.mrb[0].mxu0 %v1202
      %v1343 = vpop.f32.mrb[0].mxu0
      %v1344 = vadd.f32 0.0, %v1343
      %v1345 = vpop.f32.mrb[0].mxu0
      %1346 = vmatprep.mubr.f32.mxu0 0.0
      %1347 = vmatmul.mubr.f32.gmra.mrb[0].mxu0 %v1205
      %v1348 = vpop.f32.mrb[0].mxu0
      %v1349 = vadd.f32 0.0, %v1348
      %v1350 = vpop.f32.mrb[0].mxu0
      %1351 = vdwg.mxu0
      %v1352 = vadd.f32 %v1125, %v1274
      %v1353 = vadd.f32 %v1126, %v1279
      %v1354 = vadd.f32 %v1127, %v1284
      %v1355 = vadd.f32 %v1128, %v1289
      %v1356 = vadd.f32 %v1129, %v1294
      %v1357 = vadd.f32 %v1130, %v1299
      %v1358 = vadd.f32 %v1131, %v1304
      %v1359 = vadd.f32 %v1132, %v1309
      %v1360 = vadd.f32 %v1133, %v1314
      %v1361 = vadd.f32 %v1134, %v1319
      %v1362 = vadd.f32 %v1135, %v1324
      %v1363 = vadd.f32 %v1136, %v1329
      %v1364 = vadd.f32 %v1137, %v1334
      %v1365 = vadd.f32 %v1138, %v1339
      %v1366 = vadd.f32 %v1139, %v1344
      %v1367 = vadd.f32 %v1140, %v1349
      %v1368 = vld [vmem:[%s913 + $0x2] sm:$0xff]
      %v1369 = vld [vmem:[%s913 + $0xa] sm:$0xff]
      %v1370 = vld [vmem:[%s913 + $0x1a] sm:$0xff]
      %v1371 = vld [vmem:[%s913 + $0x22] sm:$0xff]
      %v1372 = vld [vmem:[%s913 + $0x32] sm:$0xff]
      %v1373 = vld [vmem:[%s913 + $0x3a] sm:$0xff]
      %v1374 = vld [vmem:[%s913 + $0x4a] sm:$0xff]
      %v1375 = vld [vmem:[%s913 + $0x52] sm:$0xff]
      %v1376 = vld [vmem:[%s913 + $0x62] sm:$0xff]
      %v1377 = vld [vmem:[%s913 + $0x6a] sm:$0xff]
      %v1378 = vld [vmem:[%s913 + $0x7a] sm:$0xff]
      %v1379 = vld [vmem:[%s913 + $0x82] sm:$0xff]
      %v1380 = vld [vmem:[%s913 + $0x92] sm:$0xff]
      %v1381 = vld [vmem:[%s913 + $0x9a] sm:$0xff]
      %v1382 = vld [vmem:[%s913 + $0xaa] sm:$0xff]
      %v1383 = vld [vmem:[%s913 + $0xb2] sm:$0xff]
      %s1384 = scalar_lea.vmem %s1, 40
      %v1385 = vld [vmem:[%s1384] sm:$0xff]
      %v1387 = vsel %vm299, %v1368, 0
      %v1390 = vsel %vm299, %v1369, 0
      %v1393 = vsel %vm299, %v1370, 0
      %v1396 = vsel %vm299, %v1371, 0
      %v1399 = vsel %vm299, %v1372, 0
      %v1402 = vsel %vm299, %v1373, 0
      %v1405 = vsel %vm299, %v1374, 0
      %v1408 = vsel %vm299, %v1375, 0
      %v1411 = vsel %vm299, %v1376, 0
      %v1414 = vsel %vm299, %v1377, 0
      %v1417 = vsel %vm299, %v1378, 0
      %v1420 = vsel %vm299, %v1379, 0
      %v1423 = vsel %vm299, %v1380, 0
      %v1426 = vsel %vm299, %v1381, 0
      %v1429 = vsel %vm299, %v1382, 0
      %v1432 = vsel %vm299, %v1383, 0
      %1434 = vmatprep.subr.mxu0 0.0
      %1435 = vmatpush1.msra.mxu0 %v1385
      %1436 = vmatprep.subr.mxu0 0.0
      %1437 = vmatpush1.msra.mxu0 0.0
      %1438 = vmatprep.subr.mxu0 0.0
      %1439 = vmatpush1.msra.mxu0 0.0
      %1440 = vmatprep.subr.mxu0 0.0
      %1441 = vmatpush1.msra.mxu0 0.0
      %1442 = vmatprep.subr.mxu0 0.0
      %1443 = vmatpush1.msra.mxu0 0.0
      %1444 = vmatprep.subr.mxu0 0.0
      %1445 = vmatpush1.msra.mxu0 0.0
      %1446 = vmatprep.subr.mxu0 0.0
      %1447 = vmatpush1.msra.mxu0 0.0
      %1448 = vmatprep.subr.mxu0 0.0
      %1449 = vmatpush1.msra.mxu0 0.0
      %1450 = vmatprep.subr.mxu0 0.0
      %1451 = vmatpush1.msra.mxu0 0.0
      %1452 = vmatprep.subr.mxu0 0.0
      %1453 = vmatpush1.msra.mxu0 0.0
      %1454 = vmatprep.subr.mxu0 0.0
      %1455 = vmatpush1.msra.mxu0 0.0
      %1456 = vmatprep.subr.mxu0 0.0
      %1457 = vmatpush1.msra.mxu0 0.0
      %1458 = vmatprep.subr.mxu0 0.0
      %1459 = vmatpush1.msra.mxu0 0.0
      %1460 = vmatprep.subr.mxu0 0.0
      %1461 = vmatpush1.msra.mxu0 0.0
      %1462 = vmatprep.subr.mxu0 0.0
      %1463 = vmatpush1.msra.mxu0 0.0
      %1464 = vmatprep.subr.mxu0 0.0
      %1465 = vmatpush1.msra.mxu0 0.0
      %1466 = vmatprep.subr.mxu0 0.0
      %1467 = vmatpush1.msra.mxu0 0.0
      %1468 = vmatprep.subr.mxu0 0.0
      %1469 = vmatpush1.msra.mxu0 0.0
      %1470 = vmatprep.subr.mxu0 0.0
      %1471 = vmatpush1.msra.mxu0 0.0
      %1472 = vmatprep.subr.mxu0 0.0
      %1473 = vmatpush1.msra.mxu0 0.0
      %1474 = vmatprep.subr.mxu0 0.0
      %1475 = vmatpush1.msra.mxu0 0.0
      %1476 = vmatprep.subr.mxu0 0.0
      %1477 = vmatpush1.msra.mxu0 0.0
      %1478 = vmatprep.subr.mxu0 0.0
      %1479 = vmatpush1.msra.mxu0 0.0
      %1480 = vmatprep.subr.mxu0 0.0
      %1481 = vmatpush1.msra.mxu0 0.0
      %1482 = vmatprep.subr.mxu0 0.0
      %1483 = vmatpush1.msra.mxu0 0.0
      %1484 = vmatprep.subr.mxu0 0.0
      %1485 = vmatpush1.msra.mxu0 0.0
      %1486 = vmatprep.subr.mxu0 0.0
      %1487 = vmatpush1.msra.mxu0 0.0
      %1488 = vmatprep.subr.mxu0 0.0
      %1489 = vmatpush1.msra.mxu0 0.0
      %1490 = vmatprep.subr.mxu0 0.0
      %1491 = vmatpush1.msra.mxu0 0.0
      %1492 = vmatprep.subr.mxu0 0.0
      %1493 = vmatpush1.msra.mxu0 0.0
      %1494 = vmatprep.subr.mxu0 0.0
      %1495 = vmatpush1.msra.mxu0 0.0
      %1496 = vmatprep.subr.mxu0 0.0
      %1497 = vmatpush1.msra.mxu0 0.0
      %1498 = vmatprep.mubr.f32.mxu0 0.0
      %1499 = vmatmul.mubr.f32.gmra.mrb[0].mxu0 %v1387
      %v1500 = vpop.f32.mrb[0].mxu0
      %v1501 = vadd.f32 0.0, %v1500
      %v1502 = vpop.f32.mrb[0].mxu0
      %1503 = vmatprep.mubr.f32.mxu0 0.0
      %1504 = vmatmul.mubr.f32.gmra.mrb[0].mxu0 %v1390
      %v1505 = vpop.f32.mrb[0].mxu0
      %v1506 = vadd.f32 0.0, %v1505
      %v1507 = vpop.f32.mrb[0].mxu0
      %1508 = vmatprep.mubr.f32.mxu0 0.0
      %1509 = vmatmul.mubr.f32.gmra.mrb[0].mxu0 %v1393
      %v1510 = vpop.f32.mrb[0].mxu0
      %v1511 = vadd.f32 0.0, %v1510
      %v1512 = vpop.f32.mrb[0].mxu0
      %1513 = vmatprep.mubr.f32.mxu0 0.0
      %1514 = vmatmul.mubr.f32.gmra.mrb[0].mxu0 %v1396
      %v1515 = vpop.f32.mrb[0].mxu0
      %v1516 = vadd.f32 0.0, %v1515
      %v1517 = vpop.f32.mrb[0].mxu0
      %1518 = vmatprep.mubr.f32.mxu0 0.0
      %1519 = vmatmul.mubr.f32.gmra.mrb[0].mxu0 %v1399
      %v1520 = vpop.f32.mrb[0].mxu0
      %v1521 = vadd.f32 0.0, %v1520
      %v1522 = vpop.f32.mrb[0].mxu0
      %1523 = vmatprep.mubr.f32.mxu0 0.0
      %1524 = vmatmul.mubr.f32.gmra.mrb[0].mxu0 %v1402
      %v1525 = vpop.f32.mrb[0].mxu0
      %v1526 = vadd.f32 0.0, %v1525
      %v1527 = vpop.f32.mrb[0].mxu0
      %1528 = vmatprep.mubr.f32.mxu0 0.0
      %1529 = vmatmul.mubr.f32.gmra.mrb[0].mxu0 %v1405
      %v1530 = vpop.f32.mrb[0].mxu0
      %v1531 = vadd.f32 0.0, %v1530
      %v1532 = vpop.f32.mrb[0].mxu0
      %1533 = vmatprep.mubr.f32.mxu0 0.0
      %1534 = vmatmul.mubr.f32.gmra.mrb[0].mxu0 %v1408
      %v1535 = vpop.f32.mrb[0].mxu0
      %v1536 = vadd.f32 0.0, %v1535
      %v1537 = vpop.f32.mrb[0].mxu0
      %1538 = vmatprep.mubr.f32.mxu0 0.0
      %1539 = vmatmul.mubr.f32.gmra.mrb[0].mxu0 %v1411
      %v1540 = vpop.f32.mrb[0].mxu0
      %v1541 = vadd.f32 0.0, %v1540
      %v1542 = vpop.f32.mrb[0].mxu0
      %1543 = vmatprep.mubr.f32.mxu0 0.0
      %1544 = vmatmul.mubr.f32.gmra.mrb[0].mxu0 %v1414
      %v1545 = vpop.f32.mrb[0].mxu0
      %v1546 = vadd.f32 0.0, %v1545
      %v1547 = vpop.f32.mrb[0].mxu0
      %1548 = vmatprep.mubr.f32.mxu0 0.0
      %1549 = vmatmul.mubr.f32.gmra.mrb[0].mxu0 %v1417
      %v1550 = vpop.f32.mrb[0].mxu0
      %v1551 = vadd.f32 0.0, %v1550
      %v1552 = vpop.f32.mrb[0].mxu0
      %1553 = vmatprep.mubr.f32.mxu0 0.0
      %1554 = vmatmul.mubr.f32.gmra.mrb[0].mxu0 %v1420
      %v1555 = vpop.f32.mrb[0].mxu0
      %v1556 = vadd.f32 0.0, %v1555
      %v1557 = vpop.f32.mrb[0].mxu0
      %1558 = vmatprep.mubr.f32.mxu0 0.0
      %1559 = vmatmul.mubr.f32.gmra.mrb[0].mxu0 %v1423
      %v1560 = vpop.f32.mrb[0].mxu0
      %v1561 = vadd.f32 0.0, %v1560
      %v1562 = vpop.f32.mrb[0].mxu0
      %1563 = vmatprep.mubr.f32.mxu0 0.0
      %1564 = vmatmul.mubr.f32.gmra.mrb[0].mxu0 %v1426
      %v1565 = vpop.f32.mrb[0].mxu0
      %v1566 = vadd.f32 0.0, %v1565
      %v1567 = vpop.f32.mrb[0].mxu0
      %1568 = vmatprep.mubr.f32.mxu0 0.0
      %1569 = vmatmul.mubr.f32.gmra.mrb[0].mxu0 %v1429
      %v1570 = vpop.f32.mrb[0].mxu0
      %v1571 = vadd.f32 0.0, %v1570
      %v1572 = vpop.f32.mrb[0].mxu0
      %1573 = vmatprep.mubr.f32.mxu0 0.0
      %1574 = vmatmul.mubr.f32.gmra.mrb[0].mxu0 %v1432
      %v1575 = vpop.f32.mrb[0].mxu0
      %v1576 = vadd.f32 0.0, %v1575
      %v1577 = vpop.f32.mrb[0].mxu0
      %1578 = vdwg.mxu0
      %v1579 = vadd.f32 %v1352, %v1501
      %v1580 = vadd.f32 %v1353, %v1506
      %v1581 = vadd.f32 %v1354, %v1511
      %v1582 = vadd.f32 %v1355, %v1516
      %v1583 = vadd.f32 %v1356, %v1521
      %v1584 = vadd.f32 %v1357, %v1526
      %v1585 = vadd.f32 %v1358, %v1531
      %v1586 = vadd.f32 %v1359, %v1536
      %v1587 = vadd.f32 %v1360, %v1541
      %v1588 = vadd.f32 %v1361, %v1546
      %v1589 = vadd.f32 %v1362, %v1551
      %v1590 = vadd.f32 %v1363, %v1556
      %v1591 = vadd.f32 %v1364, %v1561
      %v1592 = vadd.f32 %v1365, %v1566
      %v1593 = vadd.f32 %v1366, %v1571
      %v1594 = vadd.f32 %v1367, %v1576
      %s1595 = scalar_lea.vmem %s252, 48
      %v1596 = vld [vmem:[%s1595] sm:$0xff]
      %v1597 = vld [vmem:[%s1595 + $0x8] sm:$0xff]
      %v1598 = vld [vmem:[%s1595 + $0x18] sm:$0xff]
      %v1599 = vld [vmem:[%s1595 + $0x20] sm:$0xff]
      %v1600 = vld [vmem:[%s1595 + $0x30] sm:$0xff]
      %v1601 = vld [vmem:[%s1595 + $0x38] sm:$0xff]
      %v1602 = vld [vmem:[%s1595 + $0x48] sm:$0xff]
      %v1603 = vld [vmem:[%s1595 + $0x50] sm:$0xff]
      %v1604 = vld [vmem:[%s1595 + $0x60] sm:$0xff]
      %v1605 = vld [vmem:[%s1595 + $0x68] sm:$0xff]
      %v1606 = vld [vmem:[%s1595 + $0x78] sm:$0xff]
      %v1607 = vld [vmem:[%s1595 + $0x80] sm:$0xff]
      %v1608 = vld [vmem:[%s1595 + $0x90] sm:$0xff]
      %v1609 = vld [vmem:[%s1595 + $0x98] sm:$0xff]
      %v1610 = vld [vmem:[%s1595 + $0xa8] sm:$0xff]
      %v1611 = vld [vmem:[%s1595 + $0xb0] sm:$0xff]
      %s1612 = scalar_lea.vmem %s1, 48
      %v1613 = vld [vmem:[%s1612] sm:$0xff]
      %v1615 = vsel %vm299, %v1596, 0
      %v1618 = vsel %vm299, %v1597, 0
      %v1621 = vsel %vm299, %v1598, 0
      %v1624 = vsel %vm299, %v1599, 0
      %v1627 = vsel %vm299, %v1600, 0
      %v1630 = vsel %vm299, %v1601, 0
      %v1633 = vsel %vm299, %v1602, 0
      %v1636 = vsel %vm299, %v1603, 0
      %v1639 = vsel %vm299, %v1604, 0
      %v1642 = vsel %vm299, %v1605, 0
      %v1645 = vsel %vm299, %v1606, 0
      %v1648 = vsel %vm299, %v1607, 0
      %v1651 = vsel %vm299, %v1608, 0
      %v1654 = vsel %vm299, %v1609, 0
      %v1657 = vsel %vm299, %v1610, 0
      %v1660 = vsel %vm299, %v1611, 0
      %1662 = vmatprep.subr.mxu0 0.0
      %1663 = vmatpush1.msra.mxu0 %v1613
      %1664 = vmatprep.subr.mxu0 0.0
      %1665 = vmatpush1.msra.mxu0 0.0
      %1666 = vmatprep.subr.mxu0 0.0
      %1667 = vmatpush1.msra.mxu0 0.0
      %1668 = vmatprep.subr.mxu0 0.0
      %1669 = vmatpush1.msra.mxu0 0.0
      %1670 = vmatprep.subr.mxu0 0.0
      %1671 = vmatpush1.msra.mxu0 0.0
      %1672 = vmatprep.subr.mxu0 0.0
      %1673 = vmatpush1.msra.mxu0 0.0
      %1674 = vmatprep.subr.mxu0 0.0
      %1675 = vmatpush1.msra.mxu0 0.0
      %1676 = vmatprep.subr.mxu0 0.0
      %1677 = vmatpush1.msra.mxu0 0.0
      %1678 = vmatprep.subr.mxu0 0.0
      %1679 = vmatpush1.msra.mxu0 0.0
      %1680 = vmatprep.subr.mxu0 0.0
      %1681 = vmatpush1.msra.mxu0 0.0
      %1682 = vmatprep.subr.mxu0 0.0
      %1683 = vmatpush1.msra.mxu0 0.0
      %1684 = vmatprep.subr.mxu0 0.0
      %1685 = vmatpush1.msra.mxu0 0.0
      %1686 = vmatprep.subr.mxu0 0.0
      %1687 = vmatpush1.msra.mxu0 0.0
      %1688 = vmatprep.subr.mxu0 0.0
      %1689 = vmatpush1.msra.mxu0 0.0
      %1690 = vmatprep.subr.mxu0 0.0
      %1691 = vmatpush1.msra.mxu0 0.0
      %1692 = vmatprep.subr.mxu0 0.0
      %1693 = vmatpush1.msra.mxu0 0.0
      %1694 = vmatprep.subr.mxu0 0.0
      %1695 = vmatpush1.msra.mxu0 0.0
      %1696 = vmatprep.subr.mxu0 0.0
      %1697 = vmatpush1.msra.mxu0 0.0
      %1698 = vmatprep.subr.mxu0 0.0
      %1699 = vmatpush1.msra.mxu0 0.0
      %1700 = vmatprep.subr.mxu0 0.0
      %1701 = vmatpush1.msra.mxu0 0.0
      %1702 = vmatprep.subr.mxu0 0.0
      %1703 = vmatpush1.msra.mxu0 0.0
      %1704 = vmatprep.subr.mxu0 0.0
      %1705 = vmatpush1.msra.mxu0 0.0
      %1706 = vmatprep.subr.mxu0 0.0
      %1707 = vmatpush1.msra.mxu0 0.0
      %1708 = vmatprep.subr.mxu0 0.0
      %1709 = vmatpush1.msra.mxu0 0.0
      %1710 = vmatprep.subr.mxu0 0.0
      %1711 = vmatpush1.msra.mxu0 0.0
      %1712 = vmatprep.subr.mxu0 0.0
      %1713 = vmatpush1.msra.mxu0 0.0
      %1714 = vmatprep.subr.mxu0 0.0
      %1715 = vmatpush1.msra.mxu0 0.0
      %1716 = vmatprep.subr.mxu0 0.0
      %1717 = vmatpush1.msra.mxu0 0.0
      %1718 = vmatprep.subr.mxu0 0.0
      %1719 = vmatpush1.msra.mxu0 0.0
      %1720 = vmatprep.subr.mxu0 0.0
      %1721 = vmatpush1.msra.mxu0 0.0
      %1722 = vmatprep.subr.mxu0 0.0
      %1723 = vmatpush1.msra.mxu0 0.0
      %1724 = vmatprep.subr.mxu0 0.0
      %1725 = vmatpush1.msra.mxu0 0.0
      %1726 = vmatprep.mubr.f32.mxu0 0.0
      %1727 = vmatmul.mubr.f32.gmra.mrb[0].mxu0 %v1615
      %v1728 = vpop.f32.mrb[0].mxu0
      %v1729 = vadd.f32 0.0, %v1728
      %v1730 = vpop.f32.mrb[0].mxu0
      %1731 = vmatprep.mubr.f32.mxu0 0.0
      %1732 = vmatmul.mubr.f32.gmra.mrb[0].mxu0 %v1618
      %v1733 = vpop.f32.mrb[0].mxu0
      %v1734 = vadd.f32 0.0, %v1733
      %v1735 = vpop.f32.mrb[0].mxu0
      %1736 = vmatprep.mubr.f32.mxu0 0.0
      %1737 = vmatmul.mubr.f32.gmra.mrb[0].mxu0 %v1621
      %v1738 = vpop.f32.mrb[0].mxu0
      %v1739 = vadd.f32 0.0, %v1738
      %v1740 = vpop.f32.mrb[0].mxu0
      %1741 = vmatprep.mubr.f32.mxu0 0.0
      %1742 = vmatmul.mubr.f32.gmra.mrb[0].mxu0 %v1624
      %v1743 = vpop.f32.mrb[0].mxu0
      %v1744 = vadd.f32 0.0, %v1743
      %v1745 = vpop.f32.mrb[0].mxu0
      %1746 = vmatprep.mubr.f32.mxu0 0.0
      %1747 = vmatmul.mubr.f32.gmra.mrb[0].mxu0 %v1627
      %v1748 = vpop.f32.mrb[0].mxu0
      %v1749 = vadd.f32 0.0, %v1748
      %v1750 = vpop.f32.mrb[0].mxu0
      %1751 = vmatprep.mubr.f32.mxu0 0.0
      %1752 = vmatmul.mubr.f32.gmra.mrb[0].mxu0 %v1630
      %v1753 = vpop.f32.mrb[0].mxu0
      %v1754 = vadd.f32 0.0, %v1753
      %v1755 = vpop.f32.mrb[0].mxu0
      %1756 = vmatprep.mubr.f32.mxu0 0.0
      %1757 = vmatmul.mubr.f32.gmra.mrb[0].mxu0 %v1633
      %v1758 = vpop.f32.mrb[0].mxu0
      %v1759 = vadd.f32 0.0, %v1758
      %v1760 = vpop.f32.mrb[0].mxu0
      %1761 = vmatprep.mubr.f32.mxu0 0.0
      %1762 = vmatmul.mubr.f32.gmra.mrb[0].mxu0 %v1636
      %v1763 = vpop.f32.mrb[0].mxu0
      %v1764 = vadd.f32 0.0, %v1763
      %v1765 = vpop.f32.mrb[0].mxu0
      %1766 = vmatprep.mubr.f32.mxu0 0.0
      %1767 = vmatmul.mubr.f32.gmra.mrb[0].mxu0 %v1639
      %v1768 = vpop.f32.mrb[0].mxu0
      %v1769 = vadd.f32 0.0, %v1768
      %v1770 = vpop.f32.mrb[0].mxu0
      %1771 = vmatprep.mubr.f32.mxu0 0.0
      %1772 = vmatmul.mubr.f32.gmra.mrb[0].mxu0 %v1642
      %v1773 = vpop.f32.mrb[0].mxu0
      %v1774 = vadd.f32 0.0, %v1773
      %v1775 = vpop.f32.mrb[0].mxu0
      %1776 = vmatprep.mubr.f32.mxu0 0.0
      %1777 = vmatmul.mubr.f32.gmra.mrb[0].mxu0 %v1645
      %v1778 = vpop.f32.mrb[0].mxu0
      %v1779 = vadd.f32 0.0, %v1778
      %v1780 = vpop.f32.mrb[0].mxu0
      %1781 = vmatprep.mubr.f32.mxu0 0.0
      %1782 = vmatmul.mubr.f32.gmra.mrb[0].mxu0 %v1648
      %v1783 = vpop.f32.mrb[0].mxu0
      %v1784 = vadd.f32 0.0, %v1783
      %v1785 = vpop.f32.mrb[0].mxu0
      %1786 = vmatprep.mubr.f32.mxu0 0.0
      %1787 = vmatmul.mubr.f32.gmra.mrb[0].mxu0 %v1651
      %v1788 = vpop.f32.mrb[0].mxu0
      %v1789 = vadd.f32 0.0, %v1788
      %v1790 = vpop.f32.mrb[0].mxu0
      %1791 = vmatprep.mubr.f32.mxu0 0.0
      %1792 = vmatmul.mubr.f32.gmra.mrb[0].mxu0 %v1654
      %v1793 = vpop.f32.mrb[0].mxu0
      %v1794 = vadd.f32 0.0, %v1793
      %v1795 = vpop.f32.mrb[0].mxu0
      %1796 = vmatprep.mubr.f32.mxu0 0.0
      %1797 = vmatmul.mubr.f32.gmra.mrb[0].mxu0 %v1657
      %v1798 = vpop.f32.mrb[0].mxu0
      %v1799 = vadd.f32 0.0, %v1798
      %v1800 = vpop.f32.mrb[0].mxu0
      %1801 = vmatprep.mubr.f32.mxu0 0.0
      %1802 = vmatmul.mubr.f32.gmra.mrb[0].mxu0 %v1660
      %v1803 = vpop.f32.mrb[0].mxu0
      %v1804 = vadd.f32 0.0, %v1803
      %v1805 = vpop.f32.mrb[0].mxu0
      %1806 = vdwg.mxu0
      %v1807 = vadd.f32 %v1579, %v1729
      %v1808 = vadd.f32 %v1580, %v1734
      %v1809 = vadd.f32 %v1581, %v1739
      %v1810 = vadd.f32 %v1582, %v1744
      %v1811 = vadd.f32 %v1583, %v1749
      %v1812 = vadd.f32 %v1584, %v1754
      %v1813 = vadd.f32 %v1585, %v1759
      %v1814 = vadd.f32 %v1586, %v1764
      %v1815 = vadd.f32 %v1587, %v1769
      %v1816 = vadd.f32 %v1588, %v1774
      %v1817 = vadd.f32 %v1589, %v1779
      %v1818 = vadd.f32 %v1590, %v1784
      %v1819 = vadd.f32 %v1591, %v1789
      %v1820 = vadd.f32 %v1592, %v1794
      %v1821 = vadd.f32 %v1593, %v1799
      %v1822 = vadd.f32 %v1594, %v1804
      %v1823 = vld [vmem:[%s1595 + $0x1] sm:$0xff]
      %v1824 = vld [vmem:[%s1595 + $0x9] sm:$0xff]
      %v1825 = vld [vmem:[%s1595 + $0x19] sm:$0xff]
      %v1826 = vld [vmem:[%s1595 + $0x21] sm:$0xff]
      %v1827 = vld [vmem:[%s1595 + $0x31] sm:$0xff]
      %v1828 = vld [vmem:[%s1595 + $0x39] sm:$0xff]
      %v1829 = vld [vmem:[%s1595 + $0x49] sm:$0xff]
      %v1830 = vld [vmem:[%s1595 + $0x51] sm:$0xff]
      %v1831 = vld [vmem:[%s1595 + $0x61] sm:$0xff]
      %v1832 = vld [vmem:[%s1595 + $0x69] sm:$0xff]
      %v1833 = vld [vmem:[%s1595 + $0x79] sm:$0xff]
      %v1834 = vld [vmem:[%s1595 + $0x81] sm:$0xff]
      %v1835 = vld [vmem:[%s1595 + $0x91] sm:$0xff]
      %v1836 = vld [vmem:[%s1595 + $0x99] sm:$0xff]
      %v1837 = vld [vmem:[%s1595 + $0xa9] sm:$0xff]
      %v1838 = vld [vmem:[%s1595 + $0xb1] sm:$0xff]
      %s1839 = scalar_lea.vmem %s1, 56
      %v1840 = vld [vmem:[%s1839] sm:$0xff]
      %v1842 = vsel %vm299, %v1823, 0
      %v1845 = vsel %vm299, %v1824, 0
      %v1848 = vsel %vm299, %v1825, 0
      %v1851 = vsel %vm299, %v1826, 0
      %v1854 = vsel %vm299, %v1827, 0
      %v1857 = vsel %vm299, %v1828, 0
      %v1860 = vsel %vm299, %v1829, 0
      %v1863 = vsel %vm299, %v1830, 0
      %v1866 = vsel %vm299, %v1831, 0
      %v1869 = vsel %vm299, %v1832, 0
      %v1872 = vsel %vm299, %v1833, 0
      %v1875 = vsel %vm299, %v1834, 0
      %v1878 = vsel %vm299, %v1835, 0
      %v1881 = vsel %vm299, %v1836, 0
      %v1884 = vsel %vm299, %v1837, 0
      %v1887 = vsel %vm299, %v1838, 0
      %1889 = vmatprep.subr.mxu0 0.0
      %1890 = vmatpush1.msra.mxu0 %v1840
      %1891 = vmatprep.subr.mxu0 0.0
      %1892 = vmatpush1.msra.mxu0 0.0
      %1893 = vmatprep.subr.mxu0 0.0
      %1894 = vmatpush1.msra.mxu0 0.0
      %1895 = vmatprep.subr.mxu0 0.0
      %1896 = vmatpush1.msra.mxu0 0.0
      %1897 = vmatprep.subr.mxu0 0.0
      %1898 = vmatpush1.msra.mxu0 0.0
      %1899 = vmatprep.subr.mxu0 0.0
      %1900 = vmatpush1.msra.mxu0 0.0
      %1901 = vmatprep.subr.mxu0 0.0
      %1902 = vmatpush1.msra.mxu0 0.0
      %1903 = vmatprep.subr.mxu0 0.0
      %1904 = vmatpush1.msra.mxu0 0.0
      %1905 = vmatprep.subr.mxu0 0.0
      %1906 = vmatpush1.msra.mxu0 0.0
      %1907 = vmatprep.subr.mxu0 0.0
      %1908 = vmatpush1.msra.mxu0 0.0
      %1909 = vmatprep.subr.mxu0 0.0
      %1910 = vmatpush1.msra.mxu0 0.0
      %1911 = vmatprep.subr.mxu0 0.0
      %1912 = vmatpush1.msra.mxu0 0.0
      %1913 = vmatprep.subr.mxu0 0.0
      %1914 = vmatpush1.msra.mxu0 0.0
      %1915 = vmatprep.subr.mxu0 0.0
      %1916 = vmatpush1.msra.mxu0 0.0
      %1917 = vmatprep.subr.mxu0 0.0
      %1918 = vmatpush1.msra.mxu0 0.0
      %1919 = vmatprep.subr.mxu0 0.0
      %1920 = vmatpush1.msra.mxu0 0.0
      %1921 = vmatprep.subr.mxu0 0.0
      %1922 = vmatpush1.msra.mxu0 0.0
      %1923 = vmatprep.subr.mxu0 0.0
      %1924 = vmatpush1.msra.mxu0 0.0
      %1925 = vmatprep.subr.mxu0 0.0
      %1926 = vmatpush1.msra.mxu0 0.0
      %1927 = vmatprep.subr.mxu0 0.0
      %1928 = vmatpush1.msra.mxu0 0.0
      %1929 = vmatprep.subr.mxu0 0.0
      %1930 = vmatpush1.msra.mxu0 0.0
      %1931 = vmatprep.subr.mxu0 0.0
      %1932 = vmatpush1.msra.mxu0 0.0
      %1933 = vmatprep.subr.mxu0 0.0
      %1934 = vmatpush1.msra.mxu0 0.0
      %1935 = vmatprep.subr.mxu0 0.0
      %1936 = vmatpush1.msra.mxu0 0.0
      %1937 = vmatprep.subr.mxu0 0.0
      %1938 = vmatpush1.msra.mxu0 0.0
      %1939 = vmatprep.subr.mxu0 0.0
      %1940 = vmatpush1.msra.mxu0 0.0
      %1941 = vmatprep.subr.mxu0 0.0
      %1942 = vmatpush1.msra.mxu0 0.0
      %1943 = vmatprep.subr.mxu0 0.0
      %1944 = vmatpush1.msra.mxu0 0.0
      %1945 = vmatprep.subr.mxu0 0.0
      %1946 = vmatpush1.msra.mxu0 0.0
      %1947 = vmatprep.subr.mxu0 0.0
      %1948 = vmatpush1.msra.mxu0 0.0
      %1949 = vmatprep.subr.mxu0 0.0
      %1950 = vmatpush1.msra.mxu0 0.0
      %1951 = vmatprep.subr.mxu0 0.0
      %1952 = vmatpush1.msra.mxu0 0.0
      %1953 = vmatprep.mubr.f32.mxu0 0.0
      %1954 = vmatmul.mubr.f32.gmra.mrb[0].mxu0 %v1842
      %v1955 = vpop.f32.mrb[0].mxu0
      %v1956 = vadd.f32 0.0, %v1955
      %v1957 = vpop.f32.mrb[0].mxu0
      %1958 = vmatprep.mubr.f32.mxu0 0.0
      %1959 = vmatmul.mubr.f32.gmra.mrb[0].mxu0 %v1845
      %v1960 = vpop.f32.mrb[0].mxu0
      %v1961 = vadd.f32 0.0, %v1960
      %v1962 = vpop.f32.mrb[0].mxu0
      %1963 = vmatprep.mubr.f32.mxu0 0.0
      %1964 = vmatmul.mubr.f32.gmra.mrb[0].mxu0 %v1848
      %v1965 = vpop.f32.mrb[0].mxu0
      %v1966 = vadd.f32 0.0, %v1965
      %v1967 = vpop.f32.mrb[0].mxu0
      %1968 = vmatprep.mubr.f32.mxu0 0.0
      %1969 = vmatmul.mubr.f32.gmra.mrb[0].mxu0 %v1851
      %v1970 = vpop.f32.mrb[0].mxu0
      %v1971 = vadd.f32 0.0, %v1970
      %v1972 = vpop.f32.mrb[0].mxu0
      %1973 = vmatprep.mubr.f32.mxu0 0.0
      %1974 = vmatmul.mubr.f32.gmra.mrb[0].mxu0 %v1854
      %v1975 = vpop.f32.mrb[0].mxu0
      %v1976 = vadd.f32 0.0, %v1975
      %v1977 = vpop.f32.mrb[0].mxu0
      %1978 = vmatprep.mubr.f32.mxu0 0.0
      %1979 = vmatmul.mubr.f32.gmra.mrb[0].mxu0 %v1857
      %v1980 = vpop.f32.mrb[0].mxu0
      %v1981 = vadd.f32 0.0, %v1980
      %v1982 = vpop.f32.mrb[0].mxu0
      %1983 = vmatprep.mubr.f32.mxu0 0.0
      %1984 = vmatmul.mubr.f32.gmra.mrb[0].mxu0 %v1860
      %v1985 = vpop.f32.mrb[0].mxu0
      %v1986 = vadd.f32 0.0, %v1985
      %v1987 = vpop.f32.mrb[0].mxu0
      %1988 = vmatprep.mubr.f32.mxu0 0.0
      %1989 = vmatmul.mubr.f32.gmra.mrb[0].mxu0 %v1863
      %v1990 = vpop.f32.mrb[0].mxu0
      %v1991 = vadd.f32 0.0, %v1990
      %v1992 = vpop.f32.mrb[0].mxu0
      %1993 = vmatprep.mubr.f32.mxu0 0.0
      %1994 = vmatmul.mubr.f32.gmra.mrb[0].mxu0 %v1866
      %v1995 = vpop.f32.mrb[0].mxu0
      %v1996 = vadd.f32 0.0, %v1995
      %v1997 = vpop.f32.mrb[0].mxu0
      %1998 = vmatprep.mubr.f32.mxu0 0.0
      %1999 = vmatmul.mubr.f32.gmra.mrb[0].mxu0 %v1869
      %v2000 = vpop.f32.mrb[0].mxu0
      %v2001 = vadd.f32 0.0, %v2000
      %v2002 = vpop.f32.mrb[0].mxu0
      %2003 = vmatprep.mubr.f32.mxu0 0.0
      %2004 = vmatmul.mubr.f32.gmra.mrb[0].mxu0 %v1872
      %v2005 = vpop.f32.mrb[0].mxu0
      %v2006 = vadd.f32 0.0, %v2005
      %v2007 = vpop.f32.mrb[0].mxu0
      %2008 = vmatprep.mubr.f32.mxu0 0.0
      %2009 = vmatmul.mubr.f32.gmra.mrb[0].mxu0 %v1875
      %v2010 = vpop.f32.mrb[0].mxu0
      %v2011 = vadd.f32 0.0, %v2010
      %v2012 = vpop.f32.mrb[0].mxu0
      %2013 = vmatprep.mubr.f32.mxu0 0.0
      %2014 = vmatmul.mubr.f32.gmra.mrb[0].mxu0 %v1878
      %v2015 = vpop.f32.mrb[0].mxu0
      %v2016 = vadd.f32 0.0, %v2015
      %v2017 = vpop.f32.mrb[0].mxu0
      %2018 = vmatprep.mubr.f32.mxu0 0.0
      %2019 = vmatmul.mubr.f32.gmra.mrb[0].mxu0 %v1881
      %v2020 = vpop.f32.mrb[0].mxu0
      %v2021 = vadd.f32 0.0, %v2020
      %v2022 = vpop.f32.mrb[0].mxu0
      %2023 = vmatprep.mubr.f32.mxu0 0.0
      %2024 = vmatmul.mubr.f32.gmra.mrb[0].mxu0 %v1884
      %v2025 = vpop.f32.mrb[0].mxu0
      %v2026 = vadd.f32 0.0, %v2025
      %v2027 = vpop.f32.mrb[0].mxu0
      %2028 = vmatprep.mubr.f32.mxu0 0.0
      %2029 = vmatmul.mubr.f32.gmra.mrb[0].mxu0 %v1887
      %v2030 = vpop.f32.mrb[0].mxu0
      %v2031 = vadd.f32 0.0, %v2030
      %v2032 = vpop.f32.mrb[0].mxu0
      %2033 = vdwg.mxu0
      %v2034 = vadd.f32 %v1807, %v1956
      %v2035 = vadd.f32 %v1808, %v1961
      %v2036 = vadd.f32 %v1809, %v1966
      %v2037 = vadd.f32 %v1810, %v1971
      %v2038 = vadd.f32 %v1811, %v1976
      %v2039 = vadd.f32 %v1812, %v1981
      %v2040 = vadd.f32 %v1813, %v1986
      %v2041 = vadd.f32 %v1814, %v1991
      %v2042 = vadd.f32 %v1815, %v1996
      %v2043 = vadd.f32 %v1816, %v2001
      %v2044 = vadd.f32 %v1817, %v2006
      %v2045 = vadd.f32 %v1818, %v2011
      %v2046 = vadd.f32 %v1819, %v2016
      %v2047 = vadd.f32 %v1820, %v2021
      %v2048 = vadd.f32 %v1821, %v2026
      %v2049 = vadd.f32 %v1822, %v2031
      %v2050 = vld [vmem:[%s1595 + $0x2] sm:$0xff]
      %v2051 = vld [vmem:[%s1595 + $0xa] sm:$0xff]
      %v2052 = vld [vmem:[%s1595 + $0x1a] sm:$0xff]
      %v2053 = vld [vmem:[%s1595 + $0x22] sm:$0xff]
      %v2054 = vld [vmem:[%s1595 + $0x32] sm:$0xff]
      %v2055 = vld [vmem:[%s1595 + $0x3a] sm:$0xff]
      %v2056 = vld [vmem:[%s1595 + $0x4a] sm:$0xff]
      %v2057 = vld [vmem:[%s1595 + $0x52] sm:$0xff]
      %v2058 = vld [vmem:[%s1595 + $0x62] sm:$0xff]
      %v2059 = vld [vmem:[%s1595 + $0x6a] sm:$0xff]
      %v2060 = vld [vmem:[%s1595 + $0x7a] sm:$0xff]
      %v2061 = vld [vmem:[%s1595 + $0x82] sm:$0xff]
      %v2062 = vld [vmem:[%s1595 + $0x92] sm:$0xff]
      %v2063 = vld [vmem:[%s1595 + $0x9a] sm:$0xff]
      %v2064 = vld [vmem:[%s1595 + $0xaa] sm:$0xff]
      %v2065 = vld [vmem:[%s1595 + $0xb2] sm:$0xff]
      %s2066 = scalar_lea.vmem %s1, 64
      %v2067 = vld [vmem:[%s2066] sm:$0xff]
      %v2069 = vsel %vm299, %v2050, 0
      %v2072 = vsel %vm299, %v2051, 0
      %v2075 = vsel %vm299, %v2052, 0
      %v2078 = vsel %vm299, %v2053, 0
      %v2081 = vsel %vm299, %v2054, 0
      %v2084 = vsel %vm299, %v2055, 0
      %v2087 = vsel %vm299, %v2056, 0
      %v2090 = vsel %vm299, %v2057, 0
      %v2093 = vsel %vm299, %v2058, 0
      %v2096 = vsel %vm299, %v2059, 0
      %v2099 = vsel %vm299, %v2060, 0
      %v2102 = vsel %vm299, %v2061, 0
      %v2105 = vsel %vm299, %v2062, 0
      %v2108 = vsel %vm299, %v2063, 0
      %v2111 = vsel %vm299, %v2064, 0
      %v2114 = vsel %vm299, %v2065, 0
      %2116 = vmatprep.subr.mxu0 0.0
      %2117 = vmatpush1.msra.mxu0 %v2067
      %2118 = vmatprep.subr.mxu0 0.0
      %2119 = vmatpush1.msra.mxu0 0.0
      %2120 = vmatprep.subr.mxu0 0.0
      %2121 = vmatpush1.msra.mxu0 0.0
      %2122 = vmatprep.subr.mxu0 0.0
      %2123 = vmatpush1.msra.mxu0 0.0
      %2124 = vmatprep.subr.mxu0 0.0
      %2125 = vmatpush1.msra.mxu0 0.0
      %2126 = vmatprep.subr.mxu0 0.0
      %2127 = vmatpush1.msra.mxu0 0.0
      %2128 = vmatprep.subr.mxu0 0.0
      %2129 = vmatpush1.msra.mxu0 0.0
      %2130 = vmatprep.subr.mxu0 0.0
      %2131 = vmatpush1.msra.mxu0 0.0
      %2132 = vmatprep.subr.mxu0 0.0
      %2133 = vmatpush1.msra.mxu0 0.0
      %2134 = vmatprep.subr.mxu0 0.0
      %2135 = vmatpush1.msra.mxu0 0.0
      %2136 = vmatprep.subr.mxu0 0.0
      %2137 = vmatpush1.msra.mxu0 0.0
      %2138 = vmatprep.subr.mxu0 0.0
      %2139 = vmatpush1.msra.mxu0 0.0
      %2140 = vmatprep.subr.mxu0 0.0
      %2141 = vmatpush1.msra.mxu0 0.0
      %2142 = vmatprep.subr.mxu0 0.0
      %2143 = vmatpush1.msra.mxu0 0.0
      %2144 = vmatprep.subr.mxu0 0.0
      %2145 = vmatpush1.msra.mxu0 0.0
      %2146 = vmatprep.subr.mxu0 0.0
      %2147 = vmatpush1.msra.mxu0 0.0
      %2148 = vmatprep.subr.mxu0 0.0
      %2149 = vmatpush1.msra.mxu0 0.0
      %2150 = vmatprep.subr.mxu0 0.0
      %2151 = vmatpush1.msra.mxu0 0.0
      %2152 = vmatprep.subr.mxu0 0.0
      %2153 = vmatpush1.msra.mxu0 0.0
      %2154 = vmatprep.subr.mxu0 0.0
      %2155 = vmatpush1.msra.mxu0 0.0
      %2156 = vmatprep.subr.mxu0 0.0
      %2157 = vmatpush1.msra.mxu0 0.0
      %2158 = vmatprep.subr.mxu0 0.0
      %2159 = vmatpush1.msra.mxu0 0.0
      %2160 = vmatprep.subr.mxu0 0.0
      %2161 = vmatpush1.msra.mxu0 0.0
      %2162 = vmatprep.subr.mxu0 0.0
      %2163 = vmatpush1.msra.mxu0 0.0
      %2164 = vmatprep.subr.mxu0 0.0
      %2165 = vmatpush1.msra.mxu0 0.0
      %2166 = vmatprep.subr.mxu0 0.0
      %2167 = vmatpush1.msra.mxu0 0.0
      %2168 = vmatprep.subr.mxu0 0.0
      %2169 = vmatpush1.msra.mxu0 0.0
      %2170 = vmatprep.subr.mxu0 0.0
      %2171 = vmatpush1.msra.mxu0 0.0
      %2172 = vmatprep.subr.mxu0 0.0
      %2173 = vmatpush1.msra.mxu0 0.0
      %2174 = vmatprep.subr.mxu0 0.0
      %2175 = vmatpush1.msra.mxu0 0.0
      %2176 = vmatprep.subr.mxu0 0.0
      %2177 = vmatpush1.msra.mxu0 0.0
      %2178 = vmatprep.subr.mxu0 0.0
      %2179 = vmatpush1.msra.mxu0 0.0
      %2180 = vmatprep.mubr.f32.mxu0 0.0
      %2181 = vmatmul.mubr.f32.gmra.mrb[0].mxu0 %v2069
      %v2182 = vpop.f32.mrb[0].mxu0
      %v2183 = vadd.f32 0.0, %v2182
      %v2184 = vpop.f32.mrb[0].mxu0
      %2185 = vmatprep.mubr.f32.mxu0 0.0
      %2186 = vmatmul.mubr.f32.gmra.mrb[0].mxu0 %v2072
      %v2187 = vpop.f32.mrb[0].mxu0
      %v2188 = vadd.f32 0.0, %v2187
      %v2189 = vpop.f32.mrb[0].mxu0
      %2190 = vmatprep.mubr.f32.mxu0 0.0
      %2191 = vmatmul.mubr.f32.gmra.mrb[0].mxu0 %v2075
      %v2192 = vpop.f32.mrb[0].mxu0
      %v2193 = vadd.f32 0.0, %v2192
      %v2194 = vpop.f32.mrb[0].mxu0
      %2195 = vmatprep.mubr.f32.mxu0 0.0
      %2196 = vmatmul.mubr.f32.gmra.mrb[0].mxu0 %v2078
      %v2197 = vpop.f32.mrb[0].mxu0
      %v2198 = vadd.f32 0.0, %v2197
      %v2199 = vpop.f32.mrb[0].mxu0
      %2200 = vmatprep.mubr.f32.mxu0 0.0
      %2201 = vmatmul.mubr.f32.gmra.mrb[0].mxu0 %v2081
      %v2202 = vpop.f32.mrb[0].mxu0
      %v2203 = vadd.f32 0.0, %v2202
      %v2204 = vpop.f32.mrb[0].mxu0
      %2205 = vmatprep.mubr.f32.mxu0 0.0
      %2206 = vmatmul.mubr.f32.gmra.mrb[0].mxu0 %v2084
      %v2207 = vpop.f32.mrb[0].mxu0
      %v2208 = vadd.f32 0.0, %v2207
      %v2209 = vpop.f32.mrb[0].mxu0
      %2210 = vmatprep.mubr.f32.mxu0 0.0
      %2211 = vmatmul.mubr.f32.gmra.mrb[0].mxu0 %v2087
      %v2212 = vpop.f32.mrb[0].mxu0
      %v2213 = vadd.f32 0.0, %v2212
      %v2214 = vpop.f32.mrb[0].mxu0
      %2215 = vmatprep.mubr.f32.mxu0 0.0
      %2216 = vmatmul.mubr.f32.gmra.mrb[0].mxu0 %v2090
      %v2217 = vpop.f32.mrb[0].mxu0
      %v2218 = vadd.f32 0.0, %v2217
      %v2219 = vpop.f32.mrb[0].mxu0
      %2220 = vmatprep.mubr.f32.mxu0 0.0
      %2221 = vmatmul.mubr.f32.gmra.mrb[0].mxu0 %v2093
      %v2222 = vpop.f32.mrb[0].mxu0
      %v2223 = vadd.f32 0.0, %v2222
      %v2224 = vpop.f32.mrb[0].mxu0
      %2225 = vmatprep.mubr.f32.mxu0 0.0
      %2226 = vmatmul.mubr.f32.gmra.mrb[0].mxu0 %v2096
      %v2227 = vpop.f32.mrb[0].mxu0
      %v2228 = vadd.f32 0.0, %v2227
      %v2229 = vpop.f32.mrb[0].mxu0
      %2230 = vmatprep.mubr.f32.mxu0 0.0
      %2231 = vmatmul.mubr.f32.gmra.mrb[0].mxu0 %v2099
      %v2232 = vpop.f32.mrb[0].mxu0
      %v2233 = vadd.f32 0.0, %v2232
      %v2234 = vpop.f32.mrb[0].mxu0
      %2235 = vmatprep.mubr.f32.mxu0 0.0
      %2236 = vmatmul.mubr.f32.gmra.mrb[0].mxu0 %v2102
      %v2237 = vpop.f32.mrb[0].mxu0
      %v2238 = vadd.f32 0.0, %v2237
      %v2239 = vpop.f32.mrb[0].mxu0
      %2240 = vmatprep.mubr.f32.mxu0 0.0
      %2241 = vmatmul.mubr.f32.gmra.mrb[0].mxu0 %v2105
      %v2242 = vpop.f32.mrb[0].mxu0
      %v2243 = vadd.f32 0.0, %v2242
      %v2244 = vpop.f32.mrb[0].mxu0
      %2245 = vmatprep.mubr.f32.mxu0 0.0
      %2246 = vmatmul.mubr.f32.gmra.mrb[0].mxu0 %v2108
      %v2247 = vpop.f32.mrb[0].mxu0
      %v2248 = vadd.f32 0.0, %v2247
      %v2249 = vpop.f32.mrb[0].mxu0
      %2250 = vmatprep.mubr.f32.mxu0 0.0
      %2251 = vmatmul.mubr.f32.gmra.mrb[0].mxu0 %v2111
      %v2252 = vpop.f32.mrb[0].mxu0
      %v2253 = vadd.f32 0.0, %v2252
      %v2254 = vpop.f32.mrb[0].mxu0
      %2255 = vmatprep.mubr.f32.mxu0 0.0
      %2256 = vmatmul.mubr.f32.gmra.mrb[0].mxu0 %v2114
      %v2257 = vpop.f32.mrb[0].mxu0
      %v2258 = vadd.f32 0.0, %v2257
      %v2259 = vpop.f32.mrb[0].mxu0
      %2260 = vdwg.mxu0
      %v2261 = vadd.f32 %v2034, %v2183
      %v2262 = vadd.f32 %v2035, %v2188
      %v2263 = vadd.f32 %v2036, %v2193
      %v2264 = vadd.f32 %v2037, %v2198
      %v2265 = vadd.f32 %v2038, %v2203
      %v2266 = vadd.f32 %v2039, %v2208
      %v2267 = vadd.f32 %v2040, %v2213
      %v2268 = vadd.f32 %v2041, %v2218
      %v2269 = vadd.f32 %v2042, %v2223
      %v2270 = vadd.f32 %v2043, %v2228
      %v2271 = vadd.f32 %v2044, %v2233
      %v2272 = vadd.f32 %v2045, %v2238
      %v2273 = vadd.f32 %v2046, %v2243
      %v2274 = vadd.f32 %v2047, %v2248
      %v2275 = vadd.f32 %v2048, %v2253
      %v2276 = vadd.f32 %v2049, %v2258
      %v2277 = vld [vmem:[%s2] sm:$0x1]
      %v2279 = vlaneseq
      %v2280 = vshrl.u32 %v2279, 7
      %v2281 = vsub.s32 0, %v2280
      %v2282 = vrot.slane %v2277, %v2281
      %v2284 = vadd.f32 %v2261, %v2282
      %v2285 = vadd.f32 %v2262, %v2282
      %v2286 = vadd.f32 %v2263, %v2282
      %v2287 = vadd.f32 %v2264, %v2282
      %v2288 = vadd.f32 %v2265, %v2282
      %v2289 = vadd.f32 %v2266, %v2282
      %v2290 = vadd.f32 %v2267, %v2282
      %v2291 = vadd.f32 %v2268, %v2282
      %v2292 = vadd.f32 %v2269, %v2282
      %v2293 = vadd.f32 %v2270, %v2282
      %v2294 = vadd.f32 %v2271, %v2282
      %v2295 = vadd.f32 %v2272, %v2282
      %v2296 = vadd.f32 %v2273, %v2282
      %v2297 = vadd.f32 %v2274, %v2282
      %v2298 = vadd.f32 %v2275, %v2282
      %v2299 = vadd.f32 %v2276, %v2282
      %v2300 = vsub.f32 0.0, %v2284
      %v2301 = vsub.f32 0.0, %v2285
      %v2302 = vsub.f32 0.0, %v2286
      %v2303 = vsub.f32 0.0, %v2287
      %v2304 = vsub.f32 0.0, %v2288
      %v2305 = vsub.f32 0.0, %v2289
      %v2306 = vsub.f32 0.0, %v2290
      %v2307 = vsub.f32 0.0, %v2291
      %v2308 = vsub.f32 0.0, %v2292
      %v2309 = vsub.f32 0.0, %v2293
      %v2310 = vsub.f32 0.0, %v2294
      %v2311 = vsub.f32 0.0, %v2295
      %v2312 = vsub.f32 0.0, %v2296
      %v2313 = vsub.f32 0.0, %v2297
      %v2314 = vsub.f32 0.0, %v2298
      %v2315 = vsub.f32 0.0, %v2299
      %v2316 = vmul.f32 %v2300, 1.442695
      %v2317 = vpow.pop %v2316
      %v2318 = vmul.f32 %v2301, 1.442695
      %v2319 = vpow.pop %v2318
      %v2320 = vmul.f32 %v2302, 1.442695
      %v2321 = vpow.pop %v2320
      %v2322 = vmul.f32 %v2303, 1.442695
      %v2323 = vpow.pop %v2322
      %v2324 = vmul.f32 %v2304, 1.442695
      %v2325 = vpow.pop %v2324
      %v2326 = vmul.f32 %v2305, 1.442695
      %v2327 = vpow.pop %v2326
      %v2328 = vmul.f32 %v2306, 1.442695
      %v2329 = vpow.pop %v2328
      %v2330 = vmul.f32 %v2307, 1.442695
      %v2331 = vpow.pop %v2330
      %v2332 = vmul.f32 %v2308, 1.442695
      %v2333 = vpow.pop %v2332
      %v2334 = vmul.f32 %v2309, 1.442695
      %v2335 = vpow.pop %v2334
      %v2336 = vmul.f32 %v2310, 1.442695
      %v2337 = vpow.pop %v2336
      %v2338 = vmul.f32 %v2311, 1.442695
      %v2339 = vpow.pop %v2338
      %v2340 = vmul.f32 %v2312, 1.442695
      %v2341 = vpow.pop %v2340
      %v2342 = vmul.f32 %v2313, 1.442695
      %v2343 = vpow.pop %v2342
      %v2344 = vmul.f32 %v2314, 1.442695
      %v2345 = vpow.pop %v2344
      %v2346 = vmul.f32 %v2315, 1.442695
      %v2347 = vpow.pop %v2346
      %v2348 = vadd.f32 %v2317, 1.0
      %v2349 = vadd.f32 %v2319, 1.0
      %v2350 = vadd.f32 %v2321, 1.0
      %v2351 = vadd.f32 %v2323, 1.0
      %v2352 = vadd.f32 %v2325, 1.0
      %v2353 = vadd.f32 %v2327, 1.0
      %v2354 = vadd.f32 %v2329, 1.0
      %v2355 = vadd.f32 %v2331, 1.0
      %v2356 = vadd.f32 %v2333, 1.0
      %v2357 = vadd.f32 %v2335, 1.0
      %v2358 = vadd.f32 %v2337, 1.0
      %v2359 = vadd.f32 %v2339, 1.0
      %v2360 = vadd.f32 %v2341, 1.0
      %v2361 = vadd.f32 %v2343, 1.0
      %v2362 = vadd.f32 %v2345, 1.0
      %v2363 = vadd.f32 %v2347, 1.0
      %v2364 = vrcp.pop %v2348
      %v2365 = vmul.f32 %v2284, %v2364
      %v2366 = vrcp.pop %v2349
      %v2367 = vmul.f32 %v2285, %v2366
      %v2368 = vrcp.pop %v2350
      %v2369 = vmul.f32 %v2286, %v2368
      %v2370 = vrcp.pop %v2351
      %v2371 = vmul.f32 %v2287, %v2370
      %v2372 = vrcp.pop %v2352
      %v2373 = vmul.f32 %v2288, %v2372
      %v2374 = vrcp.pop %v2353
      %v2375 = vmul.f32 %v2289, %v2374
      %v2376 = vrcp.pop %v2354
      %v2377 = vmul.f32 %v2290, %v2376
      %v2378 = vrcp.pop %v2355
      %v2379 = vmul.f32 %v2291, %v2378
      %v2380 = vrcp.pop %v2356
      %v2381 = vmul.f32 %v2292, %v2380
      %v2382 = vrcp.pop %v2357
      %v2383 = vmul.f32 %v2293, %v2382
      %v2384 = vrcp.pop %v2358
      %v2385 = vmul.f32 %v2294, %v2384
      %v2386 = vrcp.pop %v2359
      %v2387 = vmul.f32 %v2295, %v2386
      %v2388 = vrcp.pop %v2360
      %v2389 = vmul.f32 %v2296, %v2388
      %v2390 = vrcp.pop %v2361
      %v2391 = vmul.f32 %v2297, %v2390
      %v2392 = vrcp.pop %v2362
      %v2393 = vmul.f32 %v2298, %v2392
      %v2394 = vrcp.pop %v2363
      %v2395 = vmul.f32 %v2299, %v2394
      %v2396 = vld [vmem:[%s3] sm:$0xf]
      %v2397 = vld [vmem:[%s4] sm:$0x1]
      %v2399 = vlaneseq
      %v2400 = vshrl.u32 %v2399, 7
      %v2401 = vsub.s32 0, %v2400
      %v2402 = vrot.slane %v2397, %v2401
      %vm2404 = vcmask 31744
      %v2406 = vsel %vm2404, %v2365, 0
      %v2409 = vsel %vm2404, %v2367, 0
      %v2412 = vsel %vm2404, %v2369, 0
      %v2415 = vsel %vm2404, %v2371, 0
      %v2418 = vsel %vm2404, %v2373, 0
      %v2421 = vsel %vm2404, %v2375, 0
      %v2424 = vsel %vm2404, %v2377, 0
      %v2427 = vsel %vm2404, %v2379, 0
      %v2430 = vsel %vm2404, %v2381, 0
      %v2433 = vsel %vm2404, %v2383, 0
      %v2436 = vsel %vm2404, %v2385, 0
      %v2439 = vsel %vm2404, %v2387, 0
      %v2442 = vsel %vm2404, %v2389, 0
      %v2445 = vsel %vm2404, %v2391, 0
      %v2448 = vsel %vm2404, %v2393, 0
      %v2451 = vsel %vm2404, %v2395, 0
      %vm2453 = vcmask 1043456
      %v2455 = vsel %vm2453, %v2396, 0
      %2457 = vmatprep.subr.mxu0 0.0
      %2458 = vmatpush1.msra.mxu0 %v2455
      %2459 = vmatprep.subr.mxu0 0.0
      %2460 = vmatpush1.msra.mxu0 0.0
      %2461 = vmatprep.subr.mxu0 0.0
      %2462 = vmatpush1.msra.mxu0 0.0
      %2463 = vmatprep.subr.mxu0 0.0
      %2464 = vmatpush1.msra.mxu0 0.0
      %2465 = vmatprep.subr.mxu0 0.0
      %2466 = vmatpush1.msra.mxu0 0.0
      %2467 = vmatprep.subr.mxu0 0.0
      %2468 = vmatpush1.msra.mxu0 0.0
      %2469 = vmatprep.subr.mxu0 0.0
      %2470 = vmatpush1.msra.mxu0 0.0
      %2471 = vmatprep.subr.mxu0 0.0
      %2472 = vmatpush1.msra.mxu0 0.0
      %2473 = vmatprep.subr.mxu0 0.0
      %2474 = vmatpush1.msra.mxu0 0.0
      %2475 = vmatprep.subr.mxu0 0.0
      %2476 = vmatpush1.msra.mxu0 0.0
      %2477 = vmatprep.subr.mxu0 0.0
      %2478 = vmatpush1.msra.mxu0 0.0
      %2479 = vmatprep.subr.mxu0 0.0
      %2480 = vmatpush1.msra.mxu0 0.0
      %2481 = vmatprep.subr.mxu0 0.0
      %2482 = vmatpush1.msra.mxu0 0.0
      %2483 = vmatprep.subr.mxu0 0.0
      %2484 = vmatpush1.msra.mxu0 0.0
      %2485 = vmatprep.subr.mxu0 0.0
      %2486 = vmatpush1.msra.mxu0 0.0
      %2487 = vmatprep.subr.mxu0 0.0
      %2488 = vmatpush1.msra.mxu0 0.0
      %2489 = vmatprep.subr.mxu0 0.0
      %2490 = vmatpush1.msra.mxu0 0.0
      %2491 = vmatprep.subr.mxu0 0.0
      %2492 = vmatpush1.msra.mxu0 0.0
      %2493 = vmatprep.subr.mxu0 0.0
      %2494 = vmatpush1.msra.mxu0 0.0
      %2495 = vmatprep.subr.mxu0 0.0
      %2496 = vmatpush1.msra.mxu0 0.0
      %2497 = vmatprep.subr.mxu0 0.0
      %2498 = vmatpush1.msra.mxu0 0.0
      %2499 = vmatprep.subr.mxu0 0.0
      %2500 = vmatpush1.msra.mxu0 0.0
      %2501 = vmatprep.subr.mxu0 0.0
      %2502 = vmatpush1.msra.mxu0 0.0
      %2503 = vmatprep.subr.mxu0 0.0
      %2504 = vmatpush1.msra.mxu0 0.0
      %2505 = vmatprep.subr.mxu0 0.0
      %2506 = vmatpush1.msra.mxu0 0.0
      %2507 = vmatprep.subr.mxu0 0.0
      %2508 = vmatpush1.msra.mxu0 0.0
      %2509 = vmatprep.subr.mxu0 0.0
      %2510 = vmatpush1.msra.mxu0 0.0
      %2511 = vmatprep.subr.mxu0 0.0
      %2512 = vmatpush1.msra.mxu0 0.0
      %2513 = vmatprep.subr.mxu0 0.0
      %2514 = vmatpush1.msra.mxu0 0.0
      %2515 = vmatprep.subr.mxu0 0.0
      %2516 = vmatpush1.msra.mxu0 0.0
      %2517 = vmatprep.subr.mxu0 0.0
      %2518 = vmatpush1.msra.mxu0 0.0
      %2519 = vmatprep.subr.mxu0 0.0
      %2520 = vmatpush1.msra.mxu0 0.0
      %2521 = vmatprep.mubr.f32.mxu0 0.0
      %2522 = vmatmul.mubr.f32.gmra.mrb[0].mxu0 %v2406
      %v2523 = vpop.f32.mrb[0].mxu0
      %v2524 = vadd.f32 %v2402, %v2523
      %v2525 = vpop.f32.mrb[0].mxu0
      %2526 = vmatprep.mubr.f32.mxu0 0.0
      %2527 = vmatmul.mubr.f32.gmra.mrb[0].mxu0 %v2409
      %v2528 = vpop.f32.mrb[0].mxu0
      %v2529 = vadd.f32 %v2402, %v2528
      %v2530 = vpop.f32.mrb[0].mxu0
      %2531 = vmatprep.mubr.f32.mxu0 0.0
      %2532 = vmatmul.mubr.f32.gmra.mrb[0].mxu0 %v2412
      %v2533 = vpop.f32.mrb[0].mxu0
      %v2534 = vadd.f32 %v2402, %v2533
      %v2535 = vpop.f32.mrb[0].mxu0
      %2536 = vmatprep.mubr.f32.mxu0 0.0
      %2537 = vmatmul.mubr.f32.gmra.mrb[0].mxu0 %v2415
      %v2538 = vpop.f32.mrb[0].mxu0
      %v2539 = vadd.f32 %v2402, %v2538
      %v2540 = vpop.f32.mrb[0].mxu0
      %2541 = vmatprep.mubr.f32.mxu0 0.0
      %2542 = vmatmul.mubr.f32.gmra.mrb[0].mxu0 %v2418
      %v2543 = vpop.f32.mrb[0].mxu0
      %v2544 = vadd.f32 %v2402, %v2543
      %v2545 = vpop.f32.mrb[0].mxu0
      %2546 = vmatprep.mubr.f32.mxu0 0.0
      %2547 = vmatmul.mubr.f32.gmra.mrb[0].mxu0 %v2421
      %v2548 = vpop.f32.mrb[0].mxu0
      %v2549 = vadd.f32 %v2402, %v2548
      %v2550 = vpop.f32.mrb[0].mxu0
      %2551 = vmatprep.mubr.f32.mxu0 0.0
      %2552 = vmatmul.mubr.f32.gmra.mrb[0].mxu0 %v2424
      %v2553 = vpop.f32.mrb[0].mxu0
      %v2554 = vadd.f32 %v2402, %v2553
      %v2555 = vpop.f32.mrb[0].mxu0
      %2556 = vmatprep.mubr.f32.mxu0 0.0
      %2557 = vmatmul.mubr.f32.gmra.mrb[0].mxu0 %v2427
      %v2558 = vpop.f32.mrb[0].mxu0
      %v2559 = vadd.f32 %v2402, %v2558
      %v2560 = vpop.f32.mrb[0].mxu0
      %2561 = vmatprep.mubr.f32.mxu0 0.0
      %2562 = vmatmul.mubr.f32.gmra.mrb[0].mxu0 %v2430
      %v2563 = vpop.f32.mrb[0].mxu0
      %v2564 = vadd.f32 %v2402, %v2563
      %v2565 = vpop.f32.mrb[0].mxu0
      %2566 = vmatprep.mubr.f32.mxu0 0.0
      %2567 = vmatmul.mubr.f32.gmra.mrb[0].mxu0 %v2433
      %v2568 = vpop.f32.mrb[0].mxu0
      %v2569 = vadd.f32 %v2402, %v2568
      %v2570 = vpop.f32.mrb[0].mxu0
      %2571 = vmatprep.mubr.f32.mxu0 0.0
      %2572 = vmatmul.mubr.f32.gmra.mrb[0].mxu0 %v2436
      %v2573 = vpop.f32.mrb[0].mxu0
      %v2574 = vadd.f32 %v2402, %v2573
      %v2575 = vpop.f32.mrb[0].mxu0
      %2576 = vmatprep.mubr.f32.mxu0 0.0
      %2577 = vmatmul.mubr.f32.gmra.mrb[0].mxu0 %v2439
      %v2578 = vpop.f32.mrb[0].mxu0
      %v2579 = vadd.f32 %v2402, %v2578
      %v2580 = vpop.f32.mrb[0].mxu0
      %2581 = vmatprep.mubr.f32.mxu0 0.0
      %2582 = vmatmul.mubr.f32.gmra.mrb[0].mxu0 %v2442
      %v2583 = vpop.f32.mrb[0].mxu0
      %v2584 = vadd.f32 %v2402, %v2583
      %v2585 = vpop.f32.mrb[0].mxu0
      %2586 = vmatprep.mubr.f32.mxu0 0.0
      %2587 = vmatmul.mubr.f32.gmra.mrb[0].mxu0 %v2445
      %v2588 = vpop.f32.mrb[0].mxu0
      %v2589 = vadd.f32 %v2402, %v2588
      %v2590 = vpop.f32.mrb[0].mxu0
      %2591 = vmatprep.mubr.f32.mxu0 0.0
      %2592 = vmatmul.mubr.f32.gmra.mrb[0].mxu0 %v2448
      %v2593 = vpop.f32.mrb[0].mxu0
      %v2594 = vadd.f32 %v2402, %v2593
      %v2595 = vpop.f32.mrb[0].mxu0
      %2596 = vmatprep.mubr.f32.mxu0 0.0
      %2597 = vmatmul.mubr.f32.gmra.mrb[0].mxu0 %v2451
      %v2598 = vpop.f32.mrb[0].mxu0
      %v2599 = vadd.f32 %v2402, %v2598
      %v2600 = vpop.f32.mrb[0].mxu0
      %2601 = vdwg.mxu0
      %v2602 = vsub.f32 0.0, %v2524
      %v2603 = vsub.f32 0.0, %v2529
      %v2604 = vsub.f32 0.0, %v2534
      %v2605 = vsub.f32 0.0, %v2539
      %v2606 = vsub.f32 0.0, %v2544
      %v2607 = vsub.f32 0.0, %v2549
      %v2608 = vsub.f32 0.0, %v2554
      %v2609 = vsub.f32 0.0, %v2559
      %v2610 = vsub.f32 0.0, %v2564
      %v2611 = vsub.f32 0.0, %v2569
      %v2612 = vsub.f32 0.0, %v2574
      %v2613 = vsub.f32 0.0, %v2579
      %v2614 = vsub.f32 0.0, %v2584
      %v2615 = vsub.f32 0.0, %v2589
      %v2616 = vsub.f32 0.0, %v2594
      %v2617 = vsub.f32 0.0, %v2599
      %v2618 = vmul.f32 %v2602, 1.442695
      %v2619 = vpow.pop %v2618
      %v2620 = vmul.f32 %v2603, 1.442695
      %v2621 = vpow.pop %v2620
      %v2622 = vmul.f32 %v2604, 1.442695
      %v2623 = vpow.pop %v2622
      %v2624 = vmul.f32 %v2605, 1.442695
      %v2625 = vpow.pop %v2624
      %v2626 = vmul.f32 %v2606, 1.442695
      %v2627 = vpow.pop %v2626
      %v2628 = vmul.f32 %v2607, 1.442695
      %v2629 = vpow.pop %v2628
      %v2630 = vmul.f32 %v2608, 1.442695
      %v2631 = vpow.pop %v2630
      %v2632 = vmul.f32 %v2609, 1.442695
      %v2633 = vpow.pop %v2632
      %v2634 = vmul.f32 %v2610, 1.442695
      %v2635 = vpow.pop %v2634
      %v2636 = vmul.f32 %v2611, 1.442695
      %v2637 = vpow.pop %v2636
      %v2638 = vmul.f32 %v2612, 1.442695
      %v2639 = vpow.pop %v2638
      %v2640 = vmul.f32 %v2613, 1.442695
      %v2641 = vpow.pop %v2640
      %v2642 = vmul.f32 %v2614, 1.442695
      %v2643 = vpow.pop %v2642
      %v2644 = vmul.f32 %v2615, 1.442695
      %v2645 = vpow.pop %v2644
      %v2646 = vmul.f32 %v2616, 1.442695
      %v2647 = vpow.pop %v2646
      %v2648 = vmul.f32 %v2617, 1.442695
      %v2649 = vpow.pop %v2648
      %v2650 = vadd.f32 %v2619, 1.0
      %v2651 = vadd.f32 %v2621, 1.0
      %v2652 = vadd.f32 %v2623, 1.0
      %v2653 = vadd.f32 %v2625, 1.0
      %v2654 = vadd.f32 %v2627, 1.0
      %v2655 = vadd.f32 %v2629, 1.0
      %v2656 = vadd.f32 %v2631, 1.0
      %v2657 = vadd.f32 %v2633, 1.0
      %v2658 = vadd.f32 %v2635, 1.0
      %v2659 = vadd.f32 %v2637, 1.0
      %v2660 = vadd.f32 %v2639, 1.0
      %v2661 = vadd.f32 %v2641, 1.0
      %v2662 = vadd.f32 %v2643, 1.0
      %v2663 = vadd.f32 %v2645, 1.0
      %v2664 = vadd.f32 %v2647, 1.0
      %v2665 = vadd.f32 %v2649, 1.0
      %v2666 = vrcp.pop %v2650
      %v2667 = vmul.f32 %v2524, %v2666
      %v2668 = vrcp.pop %v2651
      %v2669 = vmul.f32 %v2529, %v2668
      %v2670 = vrcp.pop %v2652
      %v2671 = vmul.f32 %v2534, %v2670
      %v2672 = vrcp.pop %v2653
      %v2673 = vmul.f32 %v2539, %v2672
      %v2674 = vrcp.pop %v2654
      %v2675 = vmul.f32 %v2544, %v2674
      %v2676 = vrcp.pop %v2655
      %v2677 = vmul.f32 %v2549, %v2676
      %v2678 = vrcp.pop %v2656
      %v2679 = vmul.f32 %v2554, %v2678
      %v2680 = vrcp.pop %v2657
      %v2681 = vmul.f32 %v2559, %v2680
      %v2682 = vrcp.pop %v2658
      %v2683 = vmul.f32 %v2564, %v2682
      %v2684 = vrcp.pop %v2659
      %v2685 = vmul.f32 %v2569, %v2684
      %v2686 = vrcp.pop %v2660
      %v2687 = vmul.f32 %v2574, %v2686
      %v2688 = vrcp.pop %v2661
      %v2689 = vmul.f32 %v2579, %v2688
      %v2690 = vrcp.pop %v2662
      %v2691 = vmul.f32 %v2584, %v2690
      %v2692 = vrcp.pop %v2663
      %v2693 = vmul.f32 %v2589, %v2692
      %v2694 = vrcp.pop %v2664
      %v2695 = vmul.f32 %v2594, %v2694
      %v2696 = vrcp.pop %v2665
      %v2697 = vmul.f32 %v2599, %v2696
      %v2698 = vadd.f32 %v2667, %v1141
      %v2699 = vadd.f32 %v2669, %v1142
      %v2700 = vadd.f32 %v2671, %v1143
      %v2701 = vadd.f32 %v2673, %v1144
      %v2702 = vadd.f32 %v2675, %v1145
      %v2703 = vadd.f32 %v2677, %v1146
      %v2704 = vadd.f32 %v2679, %v1147
      %v2705 = vadd.f32 %v2681, %v1148
      %v2706 = vadd.f32 %v2683, %v1149
      %v2707 = vadd.f32 %v2685, %v1150
      %v2708 = vadd.f32 %v2687, %v1151
      %v2709 = vadd.f32 %v2689, %v1152
      %v2710 = vadd.f32 %v2691, %v1153
      %v2711 = vadd.f32 %v2693, %v1154
      %v2712 = vadd.f32 %v2695, %v1155
      %v2713 = vadd.f32 %v2697, %v1156
      %2714 = vst.msk [vmem:[%s262] sm:$0xff] %vm299, %v2698
      %2715 = vst.msk [vmem:[%s262 + $0x8] sm:$0xff] %vm299, %v2699
      %2716 = vst.msk [vmem:[%s262 + $0x10] sm:$0xff] %vm299, %v2700
      %2717 = vst.msk [vmem:[%s262 + $0x18] sm:$0xff] %vm299, %v2701
      %2718 = vst.msk [vmem:[%s262 + $0x20] sm:$0xff] %vm299, %v2702
      %2719 = vst.msk [vmem:[%s262 + $0x28] sm:$0xff] %vm299, %v2703
      %2720 = vst.msk [vmem:[%s262 + $0x30] sm:$0xff] %vm299, %v2704
      %2721 = vst.msk [vmem:[%s262 + $0x38] sm:$0xff] %vm299, %v2705
      %2722 = vst.msk [vmem:[%s262 + $0x40] sm:$0xff] %vm299, %v2706
      %2723 = vst.msk [vmem:[%s262 + $0x48] sm:$0xff] %vm299, %v2707
      %2724 = vst.msk [vmem:[%s262 + $0x50] sm:$0xff] %vm299, %v2708
      %2725 = vst.msk [vmem:[%s262 + $0x58] sm:$0xff] %vm299, %v2709
      %2726 = vst.msk [vmem:[%s262 + $0x60] sm:$0xff] %vm299, %v2710
      %2727 = vst.msk [vmem:[%s262 + $0x68] sm:$0xff] %vm299, %v2711
      %2728 = vst.msk [vmem:[%s262 + $0x70] sm:$0xff] %vm299, %v2712
      %2729 = vst.msk [vmem:[%s262 + $0x78] sm:$0xff] %vm299, %v2713
      %s2730 = smul.u32 8, %s21
      %p2731 = scmp.lt.s32.totalorder %s20, 1
      %s2732 = scalar_select %p2731, %s20, 1
      %p2733 = scmp.lt.s32.totalorder %s2730, 15
      %s2734 = scalar_select %p2733, %s2730, 15
      %s2735 = smul.addr %s2734, 2
      %s2736 = smul.addr %s2732, 32
      %s2737 = sadd.s32 %s2735, %s2736
      %s2738 = smul.addr %s2737, 8
      %s2739 = scalar_lea.vmem %s5, %s2738
      // Predicated region
      $region41: #{tpu_custom_call.1} parent=39 // pred_check
        %p2740 = pneg %p160
      $region42: #{tpu_custom_call.1} parent=39 // pred_check_branch
        %2742 = sbr.rel (%p2740) target = $region44
      $region43: #{tpu_custom_call.1} parent=39 // pred_region
        %s2743 = smul.u32 8, %s21
      $region44: #{tpu_custom_call.1} parent=39 // pred_fallthru
        _
    $region40: #{tpu_custom_call.1} parent=5 // pred_fallthru
      _
    %p2744 = scmp.le.s32.totalorder 2, %s11
    // Predicated region
    $region45: #{tpu_custom_call.1} parent=5 // pred_check
      %p2745 = pneg %p2744
    $region46: #{tpu_custom_call.1} parent=5 // pred_check_branch
      %2747 = sbr.rel (%p2745) target = $region48
    $region47: #{tpu_custom_call.1} parent=5 // pred_region
      %s2748 = ssub.s32 %s11, 2
      // Predicated region
      $region49: #{tpu_custom_call.1} parent=47 // pred_check
        %p2749 = pneg %p166
      $region50: #{tpu_custom_call.1} parent=47 // pred_check_branch
        %2751 = sbr.rel (%p2749) target = $region52
      $region51: #{tpu_custom_call.1} parent=47 // pred_region
        %s2752 = smul.u32 8, %s23
        %p2753 = scmp.lt.s32.totalorder %s22, 1
        %s2754 = scalar_select %p2753, %s22, 1
        %p2755 = scmp.lt.s32.totalorder %s2752, 15
        %s2756 = scalar_select %p2755, %s2752, 15
        %s2757 = smul.addr %s2756, 2
        %s2758 = smul.addr %s2754, 32
        %s2759 = sadd.s32 %s2757, %s2758
        %s2760 = smul.addr %s2759, 8
        %s2761 = scalar_lea.vmem %s5, %s2760
      $region52: #{tpu_custom_call.1} parent=47 // pred_fallthru
        _
    $region48: #{tpu_custom_call.1} parent=5 // pred_fallthru
      _
  $region6: #{tpu_custom_call.1} parent=0 // loop_footer
    %s15 = sadd.s32 1, %s11
  $region7: #{tpu_custom_call.1} parent=0 // loop_footer_branch
    %10 = sbr.rel target = $region3
  $region8: #{tpu_custom_call.1} parent=0 // loop_exit
    _

</llo_original>
